<compile_context>
chip_gen: v5e
topology: v5e:2x2
jax: 0.10.0
libtpu: 0.0.40
codegen_flags: <defaults>
</compile_context>

<pallas_src>
import math
import functools

import jax
import jax.numpy as jnp
from jax.experimental import pallas as pl
from jax.experimental.pallas import tpu as pltpu


# ----------------------------------------------------------------------------
# Fused kernel: one GatedTransformerEncoderLayer per (batch-block, layer) step.
# ----------------------------------------------------------------------------
def _fused_encoder_kernel(
    x_ref,       # (Bt, S, D)   embedding block (read only at layer 0)
    wqkv_ref,    # (D, 3D)      in_proj^T  (Q columns pre-scaled by 1/sqrt(Dh))
    bqkv_ref,    # (1, 3D)
    woT_ref,     # (D, D)       out_proj^T
    bo_ref,      # (1, D)
    ang_ref,     # (1, D)       attention_norm weight
    anb_ref,     # (1, D)       attention_norm bias
    gate_ref,    # (1, D)       gate Linear(d, 1, bias=False) weight (row vector)
    wlinT_ref,   # (D, F)       linear^T
    blin_ref,    # (1, F)
    wgoT_ref,    # (F, D)       gate_out Linear(F, D)^T
    bgo_ref,     # (1, D)
    gng_ref,     # (1, D)       gate_norm weight
    gnb_ref,     # (1, D)       gate_norm bias
    o_ref,       # (Bt, S, D)   VMEM-resident activation / final output
    *,
    nhead: int,
    eps: float,
):
    layer = pl.program_id(1)

    # Layer 0 seeds the resident activation; layers >= 1 read the previous layer's
    # output directly from the resident output block (no HBM trip).
    @pl.when(layer == 0)
    def _():
        o_ref[...] = x_ref[...]

    Bt, S, D = o_ref.shape
    M = Bt * S
    Dh = D // nhead

    wqkv = wqkv_ref[...]
    mm_dtype = wqkv.dtype                      # matmul (MXU) dtype; accum stays f32

    x = o_ref[...].reshape(M, D).astype(jnp.float32)

    def layer_norm(v, g, b):
        mu = jnp.mean(v, axis=-1, keepdims=True)
        var = jnp.mean((v - mu) ** 2, axis=-1, keepdims=True)
        return (v - mu) * jax.lax.rsqrt(var + eps) * g + b

    # ---- multi-head self-attention ------------------------------------------
    # Single cast of the (M, 3D) slab to the matmul dtype; per-head slices reuse it.
    qkv = (jnp.dot(x.astype(mm_dtype), wqkv, preferred_element_type=jnp.float32)
           + bqkv_ref[...]).astype(mm_dtype)                              # (M, 3D)

    ctx_heads = []
    for h in range(nhead):                      # unrolled at trace time (small nhead)
        lo = h * Dh
        # NOTE: for Dh not a multiple of 128 these slices incur a lane-relayout copy;
        # a 128-lane-padded per-head layout would remove it (off the critical path
        # for the shapes targeted here).
        qh = qkv[:, lo:lo + Dh].reshape(Bt, S, Dh)
        kh = qkv[:, D + lo:D + lo + Dh].reshape(Bt, S, Dh)
        vh = qkv[:, 2 * D + lo:2 * D + lo + Dh].reshape(Bt, S, Dh)
        s = jnp.einsum("bqd,bkd->bqk", qh, kh,
                       preferred_element_type=jnp.float32)                # (Bt,S,S)
        s = s - jnp.max(s, axis=-1, keepdims=True)
        p = jnp.exp(s)
        p = p * pl.reciprocal(jnp.sum(p, axis=-1, keepdims=True), approx=True)
        ctx_heads.append(
            jnp.einsum("bqk,bkd->bqd", p.astype(mm_dtype), vh,
                       preferred_element_type=jnp.float32))               # (Bt,S,Dh)

    # Concatenate heads along lanes and run ONE K=D output projection (full MXU
    # contraction fill) instead of per-head K=Dh folded dots.
    ctx = jnp.concatenate(ctx_heads, axis=-1).reshape(M, D)               # (M, D) f32
    attn = jnp.dot(ctx.astype(mm_dtype), woT_ref[...],
                   preferred_element_type=jnp.float32) + bo_ref[...]      # (M, D)

    # ---- residual + attention LayerNorm (dropout p=0 -> identity) -----------
    x1 = layer_norm(x + attn, ang_ref[...], anb_ref[...])                 # (M, D) f32

    # ---- gated FFN -----------------------------------------------------------
    # gate: width-1 matmul replaced by VPU multiply + row reduction
    g = jax.nn.sigmoid(jnp.sum(x1 * gate_ref[...], axis=-1, keepdims=True))  # (M,1)

    hff = jnp.dot(x1.astype(mm_dtype), wlinT_ref[...],
                  preferred_element_type=jnp.float32) + blin_ref[...]     # (M, F)
    gh = jnp.maximum(g * hff, 0.0)                                        # ReLU
    go = jnp.dot(gh.astype(mm_dtype), wgoT_ref[...],
                 preferred_element_type=jnp.float32) + bgo_ref[...]       # (M, D)

    # ---- residual + gate LayerNorm -------------------------------------------
    out = layer_norm(x1 + go, gng_ref[...], gnb_ref[...])
    o_ref[...] = out.reshape(Bt, S, D).astype(o_ref.dtype)


# ----------------------------------------------------------------------------
# Host-side weight prep: transpose, fold softmax scale, optional bf16 cast.
# ----------------------------------------------------------------------------
_PARAM_ORDER = ("wqkv", "bqkv", "woT", "bo", "an_g", "an_b", "gate_w",
                "wlinT", "blin", "wgoT", "bgo", "gn_g", "gn_b")


def _prep_layer_params(p, nhead, matmul_dtype):
    D = p["out_proj_w"].shape[0]
    F = p["lin_w"].shape[0]
    Dh = D // nhead
    scale = 1.0 / math.sqrt(Dh)

    wqkv = jnp.asarray(p["in_proj_w"], jnp.float32).T            # (D, 3D)
    bqkv = jnp.asarray(p["in_proj_b"], jnp.float32).reshape(1, 3 * D)
    # fold the 1/sqrt(Dh) attention scale into the Q projection
    wqkv = wqkv.at[:, :D].multiply(scale)
    bqkv = bqkv.at[:, :D].multiply(scale)

    return {
        "wqkv": wqkv.astype(matmul_dtype),
        "bqkv": bqkv,
        "woT": jnp.asarray(p["out_proj_w"], jnp.float32).T.astype(matmul_dtype),
        "bo": jnp.asarray(p["out_proj_b"], jnp.float32).reshape(1, D),
        "an_g": jnp.asarray(p["an_g"], jnp.float32).reshape(1, D),
        "an_b": jnp.asarray(p["an_b"], jnp.float32).reshape(1, D),
        "gate_w": jnp.asarray(p["gate_w"], jnp.float32).reshape(1, D),
        "wlinT": jnp.asarray(p["lin_w"], jnp.float32).T.astype(matmul_dtype),  # (D, F)
        "blin": jnp.asarray(p["lin_b"], jnp.float32).reshape(1, F),
        "wgoT": jnp.asarray(p["go_w"], jnp.float32).T.astype(matmul_dtype),    # (F, D)
        "bgo": jnp.asarray(p["go_b"], jnp.float32).reshape(1, D),
        "gn_g": jnp.asarray(p["gn_g"], jnp.float32).reshape(1, D),
        "gn_b": jnp.asarray(p["gn_b"], jnp.float32).reshape(1, D),
    }


# ----------------------------------------------------------------------------
# Sizing heuristics (generation-aware via get_tpu_info, conservative fallback).
# ----------------------------------------------------------------------------
def _vmem_capacity_bytes():
    try:
        cap = int(pltpu.get_tpu_info().vmem_capacity_bytes)
        if cap > 0:
            return cap
    except Exception:
        pass
    return 64 * 1024 * 1024           # conservative (v7x-sized) fallback


def _estimate_vmem_bytes(block_b, S, D, F, nhead, mm_bytes, weight_buffers=2):
    """Rough per-step working set (activation blocks + one weight set + temps)."""
    M = block_b * S
    act = 2 * 2 * (block_b * S * D * 4)                 # x + out blocks, dbl-buffered
    w = weight_buffers * ((4 * D * D + 2 * D * F) * mm_bytes + (12 * D + 3 * F) * 4)
    interm = (M * ((3 * D) * (4 + mm_bytes) + 8 * D * 4 + 3 * F * 4)
              + nhead * block_b * S * S * 12)           # scores/softmax temporaries
    return act + w + interm


def _pick_block_b(B, S, D, F, nhead, mm_bytes, budget):
    # Largest divisor of B whose working set fits the VMEM budget.  Never split the
    # batch just to create >=2 "parallel" grid blocks: single-TC v5e/v6e gain nothing
    # from it, and a split only shrinks the MXU row dimension M = block_b*S and
    # forces weight re-DMAs.  (On v7x a megacore split only pays once each half
    # still holds >=256 rows, which VMEM pressure makes happen naturally.)
    for d in sorted((d for d in range(1, B + 1) if B % d == 0), reverse=True):
        if _estimate_vmem_bytes(d, S, D, F, nhead, mm_bytes) <= budget:
            return d
    return 1


# ----------------------------------------------------------------------------
# Wrapper: one pallas_call for the whole encoder stack.
# ----------------------------------------------------------------------------
def gated_transformer_encoder(x, params_first, params_shared, num_layer, nhead,
                              *, eps=1e-5, matmul_dtype=jnp.bfloat16, block_b=None):
    B, S, D = x.shape
    assert D % nhead == 0
    F = params_first["lin_w"].shape[0]
    mm_bytes = jnp.dtype(matmul_dtype).itemsize

    prep0 = _prep_layer_params(params_first, nhead, matmul_dtype)
    prep1 = _prep_layer_params(params_shared if num_layer > 1 else params_first,
                               nhead, matmul_dtype)
    # leading axis of size 2: index 0 = encoders[0], index 1 = the shared layer
    stacked = {k: jnp.stack([prep0[k], prep1[k]], axis=0) for k in _PARAM_ORDER}

    cap = _vmem_capacity_bytes()
    budget = int(min(0.75 * cap, 100 * 1024 * 1024))    # ~96 MiB on 128 MiB chips,
    vmem_limit = max(32 * 1024 * 1024, budget)          # ~48 MiB on 64 MiB v7x

    if block_b is None:
        block_b = _pick_block_b(B, S, D, F, nhead, mm_bytes, budget)
    assert B % block_b == 0
    num_bb = B // block_b

    kernel = functools.partial(_fused_encoder_kernel, nhead=nhead, eps=eps)
    args = (x,) + tuple(stacked[k] for k in _PARAM_ORDER)

    def build(single_buffer_weights):
        x_map = lambda b, l: (b, 0, 0)
        w_map = lambda b, l: (jnp.minimum(l, 1), 0, 0)   # layer 0 -> set 0, else set 1
        w_kwargs = ({"pipeline_mode": pl.Buffered(1)}
                    if single_buffer_weights else {})
        in_specs = [pl.BlockSpec((block_b, S, D), x_map)]
        for k in _PARAM_ORDER:
            r, c = stacked[k].shape[1], stacked[k].shape[2]
            in_specs.append(pl.BlockSpec((None, r, c), w_map, **w_kwargs))
        return pl.pallas_call(
            kernel,
            out_shape=jax.ShapeDtypeStruct((B, S, D), x.dtype),
            grid=(num_bb, num_layer),
            in_specs=in_specs,
            out_specs=pl.BlockSpec((block_b, S, D), x_map),   # resident across layers
            compiler_params=pltpu.CompilerParams(
                dimension_semantics=("parallel", "arbitrary"),
                vmem_limit_bytes=int(vmem_limit),
            ),
        )

    # Weight block indices change at most once per batch block, so single-buffering
    # the weight specs halves weight VMEM at essentially no overlap cost (matters on
    # 64 MiB v7x with large D/F).  Only attempted when the weight set is big enough
    # to matter; falls back to the default double-buffered pipeline otherwise.
    weight_set_bytes = sum(int(stacked[k].shape[1]) * int(stacked[k].shape[2])
                           * stacked[k].dtype.itemsize for k in _PARAM_ORDER)
    if weight_set_bytes > 4 * 1024 * 1024:
        try:
            return jax.block_until_ready(build(True)(*args))
        except Exception:
            pass
    return build(False)(*args)


# ----------------------------------------------------------------------------
# Pure-JAX reference (same math, original PyTorch-style weight layout).
# ----------------------------------------------------------------------------
def _layer_ref(x, p, nhead, eps=1e-5):
    B, S, D = x.shape
    Dh = D // nhead

    def ln(v, g, b):
        m = jnp.mean(v, axis=-1, keepdims=True)
        var = jnp.mean((v - m) ** 2, axis=-1, keepdims=True)
        return (v - m) / jnp.sqrt(var + eps) * g + b

    qkv = x @ p["in_proj_w"].T + p["in_proj_b"]
    q, k, v = jnp.split(qkv, 3, axis=-1)
    q = q.reshape(B, S, nhead, Dh).transpose(0, 2, 1, 3) / math.sqrt(Dh)
    k = k.reshape(B, S, nhead, Dh).transpose(0, 2, 1, 3)
    v = v.reshape(B, S, nhead, Dh).transpose(0, 2, 1, 3)
    s = jnp.einsum("bhqd,bhkd->bhqk", q, k)
    p_attn = jax.nn.softmax(s, axis=-1)
    o = jnp.einsum("bhqk,bhkd->bhqd", p_attn, v).transpose(0, 2, 1, 3).reshape(B, S, D)
    attn = o @ p["out_proj_w"].T + p["out_proj_b"]
    x1 = ln(x + attn, p["an_g"][0], p["an_b"][0])
    g = jax.nn.sigmoid(x1 @ p["gate_w"].T)
    h = x1 @ p["lin_w"].T + p["lin_b"]
    gh = jnp.maximum(g * h, 0.0)
    go = gh @ p["go_w"].T + p["go_b"]
    return ln(x1 + go, p["gn_g"][0], p["gn_b"][0])


# ----------------------------------------------------------------------------
# Deterministic parameter construction (PyTorch-style shapes).
# ----------------------------------------------------------------------------
def make_layer_params(key, D, F):
    ks = jax.random.split(key, 6)
    std = 0.02
    return {
        "in_proj_w": std * jax.random.normal(ks[0], (3 * D, D), jnp.float32),
        "in_proj_b": jnp.zeros((1, 3 * D), jnp.float32),
        "out_proj_w": std * jax.random.normal(ks[1], (D, D), jnp.float32),
        "out_proj_b": jnp.zeros((1, D), jnp.float32),
        "an_g": jnp.ones((1, D), jnp.float32),
        "an_b": jnp.zeros((1, D), jnp.float32),
        "gate_w": std * jax.random.normal(ks[2], (1, D), jnp.float32),
        "lin_w": std * jax.random.normal(ks[3], (F, D), jnp.float32),
        "lin_b": 0.01 * jax.random.normal(ks[4], (1, F), jnp.float32),
        "go_w": std * jax.random.normal(ks[5], (D, F), jnp.float32),
        "go_b": jnp.zeros((1, D), jnp.float32),
        "gn_g": jnp.ones((1, D), jnp.float32),
        "gn_b": jnp.zeros((1, D), jnp.float32),
    }


if __name__ == "__main__":
    # Small shapes consistent with the module defaults
    # (hidden_dim=128, num_attention_head=2, ffn_dim=256), short sequence.
    B, S, D = 2, 8, 128
    H = 2
    F = 256
    NUM_LAYER = 3     # layer 0 = encoders[0]; layers 1..L-1 share one weight set

    root = jax.random.PRNGKey(0)
    k_x, k_p0, k_p1 = jax.random.split(root, 3)

    x = jax.random.normal(k_x, (B, S, D), jnp.float32)
    params_first = make_layer_params(k_p0, D, F)      # encoders[0]
    params_shared = make_layer_params(k_p1, D, F)     # shared by the L-1 copies

    # pure-JAX reference
    ref = _layer_ref(x, params_first, H)
    for _ in range(NUM_LAYER - 1):
        ref = _layer_ref(ref, params_shared, H)

    # f32-matmul path: tight check of the kernel math
    out_f32 = gated_transformer_encoder(x, params_first, params_shared, NUM_LAYER, H,
                                        matmul_dtype=jnp.float32)
    out_f32 = jax.block_until_ready(out_f32)
    assert out_f32.shape == (B, S, D)
    err32 = float(jnp.max(jnp.abs(out_f32 - ref)))
    assert err32 < 5e-3, err32

    # default (bf16 matmuls, f32 accumulation) fast path: looser tolerance
    out_bf16 = gated_transformer_encoder(x, params_first, params_shared, NUM_LAYER, H)
    out_bf16 = jax.block_until_ready(out_bf16)
    err16 = float(jnp.max(jnp.abs(out_bf16 - ref)))
    assert err16 < 5e-2, err16

    print("KERNEL_OK")
</pallas_src>

<mosaic_0001>
module attributes {stable_mosaic.version = 11 : i64} {
  func.func @_fused_encoder_kernel(%arg0: i32, %arg1: i32, %arg2: memref<2x8x128xf32, #tpu.memory_space<vmem>>, %arg3: memref<1x128x384xf32, #tpu.memory_space<vmem>>, %arg4: memref<1x1x384xf32, #tpu.memory_space<vmem>>, %arg5: memref<1x128x128xf32, #tpu.memory_space<vmem>>, %arg6: memref<1x1x128xf32, #tpu.memory_space<vmem>>, %arg7: memref<1x1x128xf32, #tpu.memory_space<vmem>>, %arg8: memref<1x1x128xf32, #tpu.memory_space<vmem>>, %arg9: memref<1x1x128xf32, #tpu.memory_space<vmem>>, %arg10: memref<1x128x256xf32, #tpu.memory_space<vmem>>, %arg11: memref<1x1x256xf32, #tpu.memory_space<vmem>>, %arg12: memref<1x256x128xf32, #tpu.memory_space<vmem>>, %arg13: memref<1x1x128xf32, #tpu.memory_space<vmem>>, %arg14: memref<1x1x128xf32, #tpu.memory_space<vmem>>, %arg15: memref<1x1x128xf32, #tpu.memory_space<vmem>>, %arg16: memref<2x8x128xf32, #tpu.memory_space<vmem>>) attributes {dimension_semantics = [#tpu.dimension_semantics<parallel>, #tpu.dimension_semantics<arbitrary>], iteration_bounds = array<i64: 1, 3>, scalar_prefetch = 0 : i64, scratch_operands = 0 : i64, tpu.core_type = #tpu.core_type<tc>, window_params = [{transform_indices = @transform_0, window_bounds = array<i64: 2, 8, 128>}, {transform_indices = @transform_1, window_bounds = array<i64: 1, 128, 384>}, {transform_indices = @transform_2, window_bounds = array<i64: 1, 1, 384>}, {transform_indices = @transform_3, window_bounds = array<i64: 1, 128, 128>}, {transform_indices = @transform_4, window_bounds = array<i64: 1, 1, 128>}, {transform_indices = @transform_5, window_bounds = array<i64: 1, 1, 128>}, {transform_indices = @transform_6, window_bounds = array<i64: 1, 1, 128>}, {transform_indices = @transform_7, window_bounds = array<i64: 1, 1, 128>}, {transform_indices = @transform_8, window_bounds = array<i64: 1, 128, 256>}, {transform_indices = @transform_9, window_bounds = array<i64: 1, 1, 256>}, {transform_indices = @transform_10, window_bounds = array<i64: 1, 256, 128>}, {transform_indices = @transform_11, window_bounds = array<i64: 1, 1, 128>}, {transform_indices = @transform_12, window_bounds = array<i64: 1, 1, 128>}, {transform_indices = @transform_13, window_bounds = array<i64: 1, 1, 128>}, {transform_indices = @transform_14, window_bounds = array<i64: 2, 8, 128>}]} {
    %c0_i32 = arith.constant 0 : i32
    %0 = arith.cmpi eq, %arg1, %c0_i32 : i32
    %1 = arith.extui %0 : i1 to i32
    %c0_i32_0 = arith.constant 0 : i32
    %2 = arith.cmpi ne, %1, %c0_i32_0 : i32
    scf.if %2 {
      %c0_69 = arith.constant 0 : index
      %c0_70 = arith.constant 0 : index
      %c0_71 = arith.constant 0 : index
      %142 = vector.load %arg2[%c0_69, %c0_70, %c0_71] : memref<2x8x128xf32, #tpu.memory_space<vmem>>, vector<2x8x128xf32>
      %c0_72 = arith.constant 0 : index
      %c0_73 = arith.constant 0 : index
      %c0_74 = arith.constant 0 : index
      %143 = vector.load %arg16[%c0_72, %c0_73, %c0_74] : memref<2x8x128xf32, #tpu.memory_space<vmem>>, vector<2x8x128xf32>
      tpu.vector_store %arg16[%c0_72, %c0_73, %c0_74], %142 {strides = array<i32>} : memref<2x8x128xf32, #tpu.memory_space<vmem>>, vector<2x8x128xf32>,
    } else {
    }
    %c0 = arith.constant 0 : index
    %c0_1 = arith.constant 0 : index
    %c0_2 = arith.constant 0 : index
    %3 = vector.load %arg3[%c0, %c0_1, %c0_2] : memref<1x128x384xf32, #tpu.memory_space<vmem>>, vector<1x128x384xf32>
    %4 = vector.shape_cast %3 : vector<1x128x384xf32> to vector<128x384xf32>
    %c0_3 = arith.constant 0 : index
    %c0_4 = arith.constant 0 : index
    %c0_5 = arith.constant 0 : index
    %5 = vector.load %arg16[%c0_3, %c0_4, %c0_5] : memref<2x8x128xf32, #tpu.memory_space<vmem>>, vector<2x8x128xf32>
    %6 = vector.shape_cast %5 : vector<2x8x128xf32> to vector<16x128xf32>
    %cst = arith.constant dense<0.000000e+00> : vector<16x384xf32>
    %7 = tpu.matmul %6, %4, %cst {dimension_numbers = #tpu.dot_dimension_numbers<[1], [0], [0], [1], [0, 0, 1, 1], [], []>} : vector<16x128xf32>, vector<128x384xf32>, vector<16x384xf32> -> vector<16x384xf32>
    %c0_6 = arith.constant 0 : index
    %c0_7 = arith.constant 0 : index
    %c0_8 = arith.constant 0 : index
    %8 = vector.load %arg4[%c0_6, %c0_7, %c0_8] : memref<1x1x384xf32, #tpu.memory_space<vmem>>, vector<1x1x384xf32>
    %9 = vector.shape_cast %8 : vector<1x1x384xf32> to vector<1x384xf32>
    %10 = vector.broadcast %9 : vector<1x384xf32> to vector<16x384xf32>
    %11 = arith.addf %7, %10 : vector<16x384xf32>
    %12 = vector.extract_strided_slice %11 {offsets = [0, 0], sizes = [16, 64], strides = [1, 1]} : vector<16x384xf32> to vector<16x64xf32>
    %13 = vector.shape_cast %12 : vector<16x64xf32> to vector<2x8x64xf32>
    %14 = vector.extract_strided_slice %11 {offsets = [0, 128], sizes = [16, 64], strides = [1, 1]} : vector<16x384xf32> to vector<16x64xf32>
    %15 = vector.shape_cast %14 : vector<16x64xf32> to vector<2x8x64xf32>
    %16 = vector.extract_strided_slice %11 {offsets = [0, 256], sizes = [16, 64], strides = [1, 1]} : vector<16x384xf32> to vector<16x64xf32>
    %17 = vector.shape_cast %16 : vector<16x64xf32> to vector<2x8x64xf32>
    "tpu.trace_start"() <{level = 10 : i32, message = "bqd,bkd->bqk"}> : () -> ()
    %cst_9 = arith.constant dense<0.000000e+00> : vector<2x8x8xf32>
    %18 = tpu.matmul %13, %15, %cst_9 {dimension_numbers = #tpu.dot_dimension_numbers<[2], [2], [1], [1], [0, 0, 0, 1, 1, 1], [0], [0]>} : vector<2x8x64xf32>, vector<2x8x64xf32>, vector<2x8x8xf32> -> vector<2x8x8xf32>
    "tpu.trace_stop"() : () -> ()
    %cst_10 = arith.constant dense<0xFF800000> : vector<2x8xf32>
    %19 = vector.multi_reduction <maximumf>, %18, %cst_10 [2] : vector<2x8x8xf32> to vector<2x8xf32>
    %20 = vector.shape_cast %19 : vector<2x8xf32> to vector<2x8x1xf32>
    %21 = vector.broadcast %20 : vector<2x8x1xf32> to vector<2x8x8xf32>
    %22 = arith.subf %18, %21 : vector<2x8x8xf32>
    %23 = math.exp %22 : vector<2x8x8xf32>
    %cst_11 = arith.constant dense<0.000000e+00> : vector<2x8xf32>
    %24 = vector.multi_reduction <add>, %23, %cst_11 [2] : vector<2x8x8xf32> to vector<2x8xf32>
    %25 = vector.shape_cast %24 : vector<2x8xf32> to vector<2x8x1xf32>
    %26 = tpu.reciprocal %25 {approx = true} : vector<2x8x1xf32> -> vector<2x8x1xf32>
    %27 = vector.broadcast %26 : vector<2x8x1xf32> to vector<2x8x8xf32>
    %28 = arith.mulf %23, %27 : vector<2x8x8xf32>
    "tpu.trace_start"() <{level = 10 : i32, message = "bqk,bkd->bqd"}> : () -> ()
    %cst_12 = arith.constant dense<0.000000e+00> : vector<2x8x64xf32>
    %29 = tpu.matmul %28, %17, %cst_12 {dimension_numbers = #tpu.dot_dimension_numbers<[2], [1], [1], [2], [0, 0, 0, 1, 1, 2], [0], [0]>} : vector<2x8x8xf32>, vector<2x8x64xf32>, vector<2x8x64xf32> -> vector<2x8x64xf32>
    "tpu.trace_stop"() : () -> ()
    %30 = vector.extract_strided_slice %11 {offsets = [0, 64], sizes = [16, 64], strides = [1, 1]} : vector<16x384xf32> to vector<16x64xf32>
    %31 = vector.shape_cast %30 : vector<16x64xf32> to vector<2x8x64xf32>
    %32 = vector.extract_strided_slice %11 {offsets = [0, 192], sizes = [16, 64], strides = [1, 1]} : vector<16x384xf32> to vector<16x64xf32>
    %33 = vector.shape_cast %32 : vector<16x64xf32> to vector<2x8x64xf32>
    %34 = vector.extract_strided_slice %11 {offsets = [0, 320], sizes = [16, 64], strides = [1, 1]} : vector<16x384xf32> to vector<16x64xf32>
    %35 = vector.shape_cast %34 : vector<16x64xf32> to vector<2x8x64xf32>
    "tpu.trace_start"() <{level = 10 : i32, message = "bqd,bkd->bqk"}> : () -> ()
    %cst_13 = arith.constant dense<0.000000e+00> : vector<2x8x8xf32>
    %36 = tpu.matmul %31, %33, %cst_13 {dimension_numbers = #tpu.dot_dimension_numbers<[2], [2], [1], [1], [0, 0, 0, 1, 1, 1], [0], [0]>} : vector<2x8x64xf32>, vector<2x8x64xf32>, vector<2x8x8xf32> -> vector<2x8x8xf32>
    "tpu.trace_stop"() : () -> ()
    %cst_14 = arith.constant dense<0xFF800000> : vector<2x8xf32>
    %37 = vector.multi_reduction <maximumf>, %36, %cst_14 [2] : vector<2x8x8xf32> to vector<2x8xf32>
    %38 = vector.shape_cast %37 : vector<2x8xf32> to vector<2x8x1xf32>
    %39 = vector.broadcast %38 : vector<2x8x1xf32> to vector<2x8x8xf32>
    %40 = arith.subf %36, %39 : vector<2x8x8xf32>
    %41 = math.exp %40 : vector<2x8x8xf32>
    %cst_15 = arith.constant dense<0.000000e+00> : vector<2x8xf32>
    %42 = vector.multi_reduction <add>, %41, %cst_15 [2] : vector<2x8x8xf32> to vector<2x8xf32>
    %43 = vector.shape_cast %42 : vector<2x8xf32> to vector<2x8x1xf32>
    %44 = tpu.reciprocal %43 {approx = true} : vector<2x8x1xf32> -> vector<2x8x1xf32>
    %45 = vector.broadcast %44 : vector<2x8x1xf32> to vector<2x8x8xf32>
    %46 = arith.mulf %41, %45 : vector<2x8x8xf32>
    "tpu.trace_start"() <{level = 10 : i32, message = "bqk,bkd->bqd"}> : () -> ()
    %cst_16 = arith.constant dense<0.000000e+00> : vector<2x8x64xf32>
    %47 = tpu.matmul %46, %35, %cst_16 {dimension_numbers = #tpu.dot_dimension_numbers<[2], [1], [1], [2], [0, 0, 0, 1, 1, 2], [0], [0]>} : vector<2x8x8xf32>, vector<2x8x64xf32>, vector<2x8x64xf32> -> vector<2x8x64xf32>
    "tpu.trace_stop"() : () -> ()
    %48 = tpu.concatenate %29, %47 in 2 : vector<2x8x64xf32>, vector<2x8x64xf32> -> vector<2x8x128xf32>
    %49 = vector.shape_cast %48 : vector<2x8x128xf32> to vector<16x128xf32>
    %c0_17 = arith.constant 0 : index
    %c0_18 = arith.constant 0 : index
    %c0_19 = arith.constant 0 : index
    %50 = vector.load %arg5[%c0_17, %c0_18, %c0_19] : memref<1x128x128xf32, #tpu.memory_space<vmem>>, vector<1x128x128xf32>
    %51 = vector.shape_cast %50 : vector<1x128x128xf32> to vector<128x128xf32>
    %cst_20 = arith.constant dense<0.000000e+00> : vector<16x128xf32>
    %52 = tpu.matmul %49, %51, %cst_20 {dimension_numbers = #tpu.dot_dimension_numbers<[1], [0], [0], [1], [0, 0, 1, 1], [], []>} : vector<16x128xf32>, vector<128x128xf32>, vector<16x128xf32> -> vector<16x128xf32>
    %c0_21 = arith.constant 0 : index
    %c0_22 = arith.constant 0 : index
    %c0_23 = arith.constant 0 : index
    %53 = vector.load %arg6[%c0_21, %c0_22, %c0_23] : memref<1x1x128xf32, #tpu.memory_space<vmem>>, vector<1x1x128xf32>
    %54 = vector.shape_cast %53 : vector<1x1x128xf32> to vector<1x128xf32>
    %55 = vector.broadcast %54 : vector<1x128xf32> to vector<16x128xf32>
    %56 = arith.addf %52, %55 : vector<16x128xf32>
    %57 = arith.addf %6, %56 : vector<16x128xf32>
    %c0_24 = arith.constant 0 : index
    %c0_25 = arith.constant 0 : index
    %c0_26 = arith.constant 0 : index
    %58 = vector.load %arg7[%c0_24, %c0_25, %c0_26] : memref<1x1x128xf32, #tpu.memory_space<vmem>>, vector<1x1x128xf32>
    %59 = vector.shape_cast %58 : vector<1x1x128xf32> to vector<1x128xf32>
    %c0_27 = arith.constant 0 : index
    %c0_28 = arith.constant 0 : index
    %c0_29 = arith.constant 0 : index
    %60 = vector.load %arg8[%c0_27, %c0_28, %c0_29] : memref<1x1x128xf32, #tpu.memory_space<vmem>>, vector<1x1x128xf32>
    %61 = vector.shape_cast %60 : vector<1x1x128xf32> to vector<1x128xf32>
    %cst_30 = arith.constant dense<0.000000e+00> : vector<16xf32>
    %62 = vector.multi_reduction <add>, %57, %cst_30 [1] : vector<16x128xf32> to vector<16xf32>
    %63 = vector.shape_cast %62 : vector<16xf32> to vector<16x1xf32>
    %cst_31 = arith.constant 1.280000e+02 : f32
    %64 = vector.broadcast %cst_31 : f32 to vector<16x1xf32>
    %65 = arith.divf %63, %64 : vector<16x1xf32>
    %66 = vector.broadcast %65 : vector<16x1xf32> to vector<16x128xf32>
    %67 = arith.subf %57, %66 : vector<16x128xf32>
    %68 = arith.mulf %67, %67 : vector<16x128xf32>
    %cst_32 = arith.constant dense<0.000000e+00> : vector<16xf32>
    %69 = vector.multi_reduction <add>, %68, %cst_32 [1] : vector<16x128xf32> to vector<16xf32>
    %70 = vector.shape_cast %69 : vector<16xf32> to vector<16x1xf32>
    %cst_33 = arith.constant 1.280000e+02 : f32
    %71 = vector.broadcast %cst_33 : f32 to vector<16x1xf32>
    %72 = arith.divf %70, %71 : vector<16x1xf32>
    %73 = vector.broadcast %65 : vector<16x1xf32> to vector<16x128xf32>
    %74 = arith.subf %57, %73 : vector<16x128xf32>
    %cst_34 = arith.constant 9.99999974E-6 : f32
    %75 = vector.broadcast %cst_34 : f32 to vector<16x1xf32>
    %76 = arith.addf %72, %75 : vector<16x1xf32>
    %77 = math.rsqrt %76 : vector<16x1xf32>
    %78 = vector.broadcast %77 : vector<16x1xf32> to vector<16x128xf32>
    %79 = arith.mulf %74, %78 : vector<16x128xf32>
    %80 = vector.broadcast %59 : vector<1x128xf32> to vector<16x128xf32>
    %81 = arith.mulf %79, %80 : vector<16x128xf32>
    %82 = vector.broadcast %61 : vector<1x128xf32> to vector<16x128xf32>
    %83 = arith.addf %81, %82 : vector<16x128xf32>
    %c0_35 = arith.constant 0 : index
    %c0_36 = arith.constant 0 : index
    %c0_37 = arith.constant 0 : index
    %84 = vector.load %arg9[%c0_35, %c0_36, %c0_37] : memref<1x1x128xf32, #tpu.memory_space<vmem>>, vector<1x1x128xf32>
    %85 = vector.shape_cast %84 : vector<1x1x128xf32> to vector<1x128xf32>
    %86 = vector.broadcast %85 : vector<1x128xf32> to vector<16x128xf32>
    %87 = arith.mulf %83, %86 : vector<16x128xf32>
    %cst_38 = arith.constant dense<0.000000e+00> : vector<16xf32>
    %88 = vector.multi_reduction <add>, %87, %cst_38 [1] : vector<16x128xf32> to vector<16xf32>
    %89 = vector.shape_cast %88 : vector<16xf32> to vector<16x1xf32>
    %90 = arith.negf %89 : vector<16x1xf32>
    %91 = math.exp %90 : vector<16x1xf32>
    %cst_39 = arith.constant 1.000000e+00 : f32
    %92 = vector.broadcast %cst_39 : f32 to vector<16x1xf32>
    %93 = arith.addf %92, %91 : vector<16x1xf32>
    %94 = arith.divf %92, %93 : vector<16x1xf32>
    %c0_40 = arith.constant 0 : index
    %c0_41 = arith.constant 0 : index
    %c0_42 = arith.constant 0 : index
    %95 = vector.load %arg10[%c0_40, %c0_41, %c0_42] : memref<1x128x256xf32, #tpu.memory_space<vmem>>, vector<1x128x256xf32>
    %96 = vector.shape_cast %95 : vector<1x128x256xf32> to vector<128x256xf32>
    %cst_43 = arith.constant dense<0.000000e+00> : vector<16x256xf32>
    %97 = tpu.matmul %83, %96, %cst_43 {dimension_numbers = #tpu.dot_dimension_numbers<[1], [0], [0], [1], [0, 0, 1, 1], [], []>} : vector<16x128xf32>, vector<128x256xf32>, vector<16x256xf32> -> vector<16x256xf32>
    %c0_44 = arith.constant 0 : index
    %c0_45 = arith.constant 0 : index
    %c0_46 = arith.constant 0 : index
    %98 = vector.load %arg11[%c0_44, %c0_45, %c0_46] : memref<1x1x256xf32, #tpu.memory_space<vmem>>, vector<1x1x256xf32>
    %99 = vector.shape_cast %98 : vector<1x1x256xf32> to vector<1x256xf32>
    %100 = vector.broadcast %99 : vector<1x256xf32> to vector<16x256xf32>
    %101 = arith.addf %97, %100 : vector<16x256xf32>
    %102 = vector.broadcast %94 : vector<16x1xf32> to vector<16x256xf32>
    %103 = arith.mulf %102, %101 : vector<16x256xf32>
    %cst_47 = arith.constant 0.000000e+00 : f32
    %104 = vector.broadcast %cst_47 : f32 to vector<16x256xf32>
    %105 = arith.maximumf %103, %104 : vector<16x256xf32>
    %c0_48 = arith.constant 0 : index
    %c0_49 = arith.constant 0 : index
    %c0_50 = arith.constant 0 : index
    %106 = vector.load %arg12[%c0_48, %c0_49, %c0_50] : memref<1x256x128xf32, #tpu.memory_space<vmem>>, vector<1x256x128xf32>
    %107 = vector.shape_cast %106 : vector<1x256x128xf32> to vector<256x128xf32>
    %cst_51 = arith.constant dense<0.000000e+00> : vector<16x128xf32>
    %108 = tpu.matmul %105, %107, %cst_51 {dimension_numbers = #tpu.dot_dimension_numbers<[1], [0], [0], [1], [0, 0, 1, 1], [], []>} : vector<16x256xf32>, vector<256x128xf32>, vector<16x128xf32> -> vector<16x128xf32>
    %c0_52 = arith.constant 0 : index
    %c0_53 = arith.constant 0 : index
    %c0_54 = arith.constant 0 : index
    %109 = vector.load %arg13[%c0_52, %c0_53, %c0_54] : memref<1x1x128xf32, #tpu.memory_space<vmem>>, vector<1x1x128xf32>
    %110 = vector.shape_cast %109 : vector<1x1x128xf32> to vector<1x128xf32>
    %111 = vector.broadcast %110 : vector<1x128xf32> to vector<16x128xf32>
    %112 = arith.addf %108, %111 : vector<16x128xf32>
    %113 = arith.addf %83, %112 : vector<16x128xf32>
    %c0_55 = arith.constant 0 : index
    %c0_56 = arith.constant 0 : index
    %c0_57 = arith.constant 0 : index
    %114 = vector.load %arg14[%c0_55, %c0_56, %c0_57] : memref<1x1x128xf32, #tpu.memory_space<vmem>>, vector<1x1x128xf32>
    %115 = vector.shape_cast %114 : vector<1x1x128xf32> to vector<1x128xf32>
    %c0_58 = arith.constant 0 : index
    %c0_59 = arith.constant 0 : index
    %c0_60 = arith.constant 0 : index
    %116 = vector.load %arg15[%c0_58, %c0_59, %c0_60] : memref<1x1x128xf32, #tpu.memory_space<vmem>>, vector<1x1x128xf32>
    %117 = vector.shape_cast %116 : vector<1x1x128xf32> to vector<1x128xf32>
    %cst_61 = arith.constant dense<0.000000e+00> : vector<16xf32>
    %118 = vector.multi_reduction <add>, %113, %cst_61 [1] : vector<16x128xf32> to vector<16xf32>
    %119 = vector.shape_cast %118 : vector<16xf32> to vector<16x1xf32>
    %cst_62 = arith.constant 1.280000e+02 : f32
    %120 = vector.broadcast %cst_62 : f32 to vector<16x1xf32>
    %121 = arith.divf %119, %120 : vector<16x1xf32>
    %122 = vector.broadcast %121 : vector<16x1xf32> to vector<16x128xf32>
    %123 = arith.subf %113, %122 : vector<16x128xf32>
    %124 = arith.mulf %123, %123 : vector<16x128xf32>
    %cst_63 = arith.constant dense<0.000000e+00> : vector<16xf32>
    %125 = vector.multi_reduction <add>, %124, %cst_63 [1] : vector<16x128xf32> to vector<16xf32>
    %126 = vector.shape_cast %125 : vector<16xf32> to vector<16x1xf32>
    %cst_64 = arith.constant 1.280000e+02 : f32
    %127 = vector.broadcast %cst_64 : f32 to vector<16x1xf32>
    %128 = arith.divf %126, %127 : vector<16x1xf32>
    %129 = vector.broadcast %121 : vector<16x1xf32> to vector<16x128xf32>
    %130 = arith.subf %113, %129 : vector<16x128xf32>
    %cst_65 = arith.constant 9.99999974E-6 : f32
    %131 = vector.broadcast %cst_65 : f32 to vector<16x1xf32>
    %132 = arith.addf %128, %131 : vector<16x1xf32>
    %133 = math.rsqrt %132 : vector<16x1xf32>
    %134 = vector.broadcast %133 : vector<16x1xf32> to vector<16x128xf32>
    %135 = arith.mulf %130, %134 : vector<16x128xf32>
    %136 = vector.broadcast %115 : vector<1x128xf32> to vector<16x128xf32>
    %137 = arith.mulf %135, %136 : vector<16x128xf32>
    %138 = vector.broadcast %117 : vector<1x128xf32> to vector<16x128xf32>
    %139 = arith.addf %137, %138 : vector<16x128xf32>
    %140 = vector.shape_cast %139 : vector<16x128xf32> to vector<2x8x128xf32>
    %c0_66 = arith.constant 0 : index
    %c0_67 = arith.constant 0 : index
    %c0_68 = arith.constant 0 : index
    %141 = vector.load %arg16[%c0_66, %c0_67, %c0_68] : memref<2x8x128xf32, #tpu.memory_space<vmem>>, vector<2x8x128xf32>
    tpu.vector_store %arg16[%c0_66, %c0_67, %c0_68], %140 {strides = array<i32>} : memref<2x8x128xf32, #tpu.memory_space<vmem>>, vector<2x8x128xf32>,
    return
  }
  func.func @transform_0(%arg0: i32, %arg1: i32) -> (i32, i32, i32) {
    %c0_i32 = arith.constant 0 : i32
    %c0_i32_0 = arith.constant 0 : i32
    %c0_i32_1 = arith.constant 0 : i32
    return %arg0, %c0_i32, %c0_i32_0 : i32, i32, i32
  }
  func.func @transform_1(%arg0: i32, %arg1: i32) -> (i32, i32, i32) {
    %c1_i32 = arith.constant 1 : i32
    %0 = arith.minsi %arg1, %c1_i32 : i32
    %c0_i32 = arith.constant 0 : i32
    %c0_i32_0 = arith.constant 0 : i32
    %c0_i32_1 = arith.constant 0 : i32
    return %0, %c0_i32, %c0_i32_0 : i32, i32, i32
  }
  func.func @transform_2(%arg0: i32, %arg1: i32) -> (i32, i32, i32) {
    %c1_i32 = arith.constant 1 : i32
    %0 = arith.minsi %arg1, %c1_i32 : i32
    %c0_i32 = arith.constant 0 : i32
    %c0_i32_0 = arith.constant 0 : i32
    %c0_i32_1 = arith.constant 0 : i32
    return %0, %c0_i32, %c0_i32_0 : i32, i32, i32
  }
  func.func @transform_3(%arg0: i32, %arg1: i32) -> (i32, i32, i32) {
    %c1_i32 = arith.constant 1 : i32
    %0 = arith.minsi %arg1, %c1_i32 : i32
    %c0_i32 = arith.constant 0 : i32
    %c0_i32_0 = arith.constant 0 : i32
    %c0_i32_1 = arith.constant 0 : i32
    return %0, %c0_i32, %c0_i32_0 : i32, i32, i32
  }
  func.func @transform_4(%arg0: i32, %arg1: i32) -> (i32, i32, i32) {
    %c1_i32 = arith.constant 1 : i32
    %0 = arith.minsi %arg1, %c1_i32 : i32
    %c0_i32 = arith.constant 0 : i32
    %c0_i32_0 = arith.constant 0 : i32
    %c0_i32_1 = arith.constant 0 : i32
    return %0, %c0_i32, %c0_i32_0 : i32, i32, i32
  }
  func.func @transform_5(%arg0: i32, %arg1: i32) -> (i32, i32, i32) {
    %c1_i32 = arith.constant 1 : i32
    %0 = arith.minsi %arg1, %c1_i32 : i32
    %c0_i32 = arith.constant 0 : i32
    %c0_i32_0 = arith.constant 0 : i32
    %c0_i32_1 = arith.constant 0 : i32
    return %0, %c0_i32, %c0_i32_0 : i32, i32, i32
  }
  func.func @transform_6(%arg0: i32, %arg1: i32) -> (i32, i32, i32) {
    %c1_i32 = arith.constant 1 : i32
    %0 = arith.minsi %arg1, %c1_i32 : i32
    %c0_i32 = arith.constant 0 : i32
    %c0_i32_0 = arith.constant 0 : i32
    %c0_i32_1 = arith.constant 0 : i32
    return %0, %c0_i32, %c0_i32_0 : i32, i32, i32
  }
  func.func @transform_7(%arg0: i32, %arg1: i32) -> (i32, i32, i32) {
    %c1_i32 = arith.constant 1 : i32
    %0 = arith.minsi %arg1, %c1_i32 : i32
    %c0_i32 = arith.constant 0 : i32
    %c0_i32_0 = arith.constant 0 : i32
    %c0_i32_1 = arith.constant 0 : i32
    return %0, %c0_i32, %c0_i32_0 : i32, i32, i32
  }
  func.func @transform_8(%arg0: i32, %arg1: i32) -> (i32, i32, i32) {
    %c1_i32 = arith.constant 1 : i32
    %0 = arith.minsi %arg1, %c1_i32 : i32
    %c0_i32 = arith.constant 0 : i32
    %c0_i32_0 = arith.constant 0 : i32
    %c0_i32_1 = arith.constant 0 : i32
    return %0, %c0_i32, %c0_i32_0 : i32, i32, i32
  }
  func.func @transform_9(%arg0: i32, %arg1: i32) -> (i32, i32, i32) {
    %c1_i32 = arith.constant 1 : i32
    %0 = arith.minsi %arg1, %c1_i32 : i32
    %c0_i32 = arith.constant 0 : i32
    %c0_i32_0 = arith.constant 0 : i32
    %c0_i32_1 = arith.constant 0 : i32
    return %0, %c0_i32, %c0_i32_0 : i32, i32, i32
  }
  func.func @transform_10(%arg0: i32, %arg1: i32) -> (i32, i32, i32) {
    %c1_i32 = arith.constant 1 : i32
    %0 = arith.minsi %arg1, %c1_i32 : i32
    %c0_i32 = arith.constant 0 : i32
    %c0_i32_0 = arith.constant 0 : i32
    %c0_i32_1 = arith.constant 0 : i32
    return %0, %c0_i32, %c0_i32_0 : i32, i32, i32
  }
  func.func @transform_11(%arg0: i32, %arg1: i32) -> (i32, i32, i32) {
    %c1_i32 = arith.constant 1 : i32
    %0 = arith.minsi %arg1, %c1_i32 : i32
    %c0_i32 = arith.constant 0 : i32
    %c0_i32_0 = arith.constant 0 : i32
    %c0_i32_1 = arith.constant 0 : i32
    return %0, %c0_i32, %c0_i32_0 : i32, i32, i32
  }
  func.func @transform_12(%arg0: i32, %arg1: i32) -> (i32, i32, i32) {
    %c1_i32 = arith.constant 1 : i32
    %0 = arith.minsi %arg1, %c1_i32 : i32
    %c0_i32 = arith.constant 0 : i32
    %c0_i32_0 = arith.constant 0 : i32
    %c0_i32_1 = arith.constant 0 : i32
    return %0, %c0_i32, %c0_i32_0 : i32, i32, i32
  }
  func.func @transform_13(%arg0: i32, %arg1: i32) -> (i32, i32, i32) {
    %c1_i32 = arith.constant 1 : i32
    %0 = arith.minsi %arg1, %c1_i32 : i32
    %c0_i32 = arith.constant 0 : i32
    %c0_i32_0 = arith.constant 0 : i32
    %c0_i32_1 = arith.constant 0 : i32
    return %0, %c0_i32, %c0_i32_0 : i32, i32, i32
  }
  func.func @transform_14(%arg0: i32, %arg1: i32) -> (i32, i32, i32) {
    %c0_i32 = arith.constant 0 : i32
    %c0_i32_0 = arith.constant 0 : i32
    %c0_i32_1 = arith.constant 0 : i32
    return %arg0, %c0_i32, %c0_i32_0 : i32, i32, i32
  }
}

</mosaic_0001>

<llo_original>
// kernel: tpu_custom_call.1
$region0: #{tpu_custom_call.1}
  #allocation0 [shape = 'u32[]', space=smem, size = 0x4, offset = 0x4, fixed_abs, tag = 'smem constant byte address 0x4 - core index']
  #allocation1 [shape = 'u32[72,128]{1,0:T(1,128)}', space=vmem, size = 0x9000, scoped, tag = 'internal scratch']
  %s0 = inlined_call_operand.hbm [shape: f32[2,8,128], index: 0, kind: input, shape index: {}]
  %s1 = inlined_call_operand.hbm [shape: f32[2,128,384], index: 1, kind: input, shape index: {}]
  %s2 = inlined_call_operand.hbm [shape: f32[2,1,384], index: 2, kind: input, shape index: {}]
  %s3 = inlined_call_operand.hbm [shape: f32[2,128,128], index: 3, kind: input, shape index: {}]
  %s4 = inlined_call_operand.vmem [shape: f32[2,1,128], index: 4, kind: input, shape index: {}]
  %s5 = inlined_call_operand.hbm [shape: f32[2,1,128], index: 5, kind: input, shape index: {}]
  %s6 = inlined_call_operand.hbm [shape: f32[2,1,128], index: 6, kind: input, shape index: {}]
  %s7 = inlined_call_operand.hbm [shape: f32[2,1,128], index: 7, kind: input, shape index: {}]
  %s8 = inlined_call_operand.hbm [shape: f32[2,128,256], index: 8, kind: input, shape index: {}]
  %s9 = inlined_call_operand.vmem [shape: f32[2,1,256], index: 9, kind: input, shape index: {}]
  %s10 = inlined_call_operand.hbm [shape: f32[2,256,128], index: 10, kind: input, shape index: {}]
  %s11 = inlined_call_operand.vmem [shape: f32[2,1,128], index: 11, kind: input, shape index: {}]
  %s12 = inlined_call_operand.vmem [shape: f32[2,1,128], index: 12, kind: input, shape index: {}]
  %s13 = inlined_call_operand.vmem [shape: f32[2,1,128], index: 13, kind: input, shape index: {}]
  %s14 = inlined_call_operand.hbm [shape: f32[2,8,128], index: 14, kind: output, shape index: {}]
  %s15 = sld [smem:[#allocation0]]
  $region129: #{tpu_custom_call.1} parent=0
    _
  %s17 = ssub.s32 1, %s15
  %s18 = scalar_select 0, %s17, %s15
  $region1: #{tpu_custom_call.1} parent=0
    #allocation2 [shape = 'u8[8192]{0}', space=vmem, size = 0x2000, scoped, tag = 'input window, operand 0, single buffered']
    #allocation3 [shape = 's32[2]{0}', space=sflag, size = 0x8, scoped, tag = 'scoped memory for tpu_custom_call.1']
    #allocation4 [shape = 's32[2]{0}', space=sflag, size = 0x8, scoped, tag = 'scoped memory for tpu_custom_call.1']
    #allocation5 [shape = 'u8[393216]{0}', space=vmem, size = 0x60000, scoped, tag = 'input window, operand 1']
    #allocation6 [shape = 's32[2]{0}', space=sflag, size = 0x8, scoped, tag = 'scoped memory for tpu_custom_call.1']
    #allocation7 [shape = 'u8[3072]{0}', space=vmem, size = 0xc00, scoped, tag = 'input window, operand 2']
    #allocation8 [shape = 'u8[131072]{0}', space=vmem, size = 0x20000, scoped, tag = 'input window, operand 3']
    #allocation9 [shape = 's32[2]{0}', space=sflag, size = 0x8, scoped, tag = 'scoped memory for tpu_custom_call.1']
    #allocation10 [shape = 'u8[1024]{0}', space=vmem, size = 0x400, scoped, tag = 'input window, operand 5']
    #allocation11 [shape = 'u8[1024]{0}', space=vmem, size = 0x400, scoped, tag = 'input window, operand 6']
    #allocation12 [shape = 's32[2]{0}', space=sflag, size = 0x8, scoped, tag = 'scoped memory for tpu_custom_call.1']
    #allocation13 [shape = 'u8[1024]{0}', space=vmem, size = 0x400, scoped, tag = 'input window, operand 7']
    #allocation14 [shape = 'u8[262144]{0}', space=vmem, size = 0x40000, scoped, tag = 'input window, operand 8']
    #allocation15 [shape = 's32[2]{0}', space=sflag, size = 0x8, scoped, tag = 'scoped memory for tpu_custom_call.1']
    #allocation16 [shape = 'u8[262144]{0}', space=vmem, size = 0x40000, scoped, tag = 'input window, operand 10']
    #allocation17 [shape = 'u8[8192]{0}', space=vmem, size = 0x2000, scoped, tag = 'output window, operand 0, single buffered']
    %19 = vsyncpa [#allocation3], 0
    %20 = vsyncpa [#allocation6], 0
    %s21 = scalar_lea.sflag [#allocation6], 1
    %22 = vsyncpa %s21, 0
    %23 = vsyncpa [#allocation9], 0
    %s24 = scalar_lea.sflag [#allocation9], 1
    %25 = vsyncpa %s24, 0
    %26 = vsyncpa [#allocation12], 0
    %s27 = scalar_lea.sflag [#allocation12], 1
    %28 = vsyncpa %s27, 0
    %29 = vsyncpa [#allocation15], 0
    %s30 = scalar_lea.sflag [#allocation15], 1
    %31 = vsyncpa %s30, 0
    %32 = vsyncpa [#allocation4], 0
    loop: start=0, step=1, limit=5
    $region2: #{tpu_custom_call.1} parent=1 // loop_pre_header
      _
    $region3: #{tpu_custom_call.1} parent=1 // loop_header
      %s34 = sphi 0, %s38
      %p35 = scmp.ge.s32.totalorder %s34, 5
      %s41 = sphi 0, %s53
      %s42 = sphi 0, %s49
      %s43 = sphi 0, %s41
      %s44 = sphi 0, %s42
      %s45 = sphi 0, %s43
      %s46 = sphi 0, %s44
      %s56 = sphi 0, %s58
      %s59 = sphi 0, %s56
      %s60 = sphi 0, %s59
      %s76 = sphi 0, %s60
      %s86 = sphi 0, %s88
      %s89 = sphi 0, %s86
      %s90 = sphi 0, %s89
      %s106 = sphi 0, %s90
      %s116 = sphi 0, %s118
      %s119 = sphi 0, %s116
      %s120 = sphi 0, %s119
      %s136 = sphi 0, %s120
      %s146 = sphi 0, %s148
      %s149 = sphi 0, %s146
      %s150 = sphi 0, %s149
      %s166 = sphi 0, %s150
      %s176 = sphi 0, %s178
      %s179 = sphi 0, %s176
      %s180 = sphi 0, %s179
      %s196 = sphi 0, %s180
      %s206 = sphi 0, %s208
      %s209 = sphi 0, %s206
      %s210 = sphi 0, %s209
      %s226 = sphi 0, %s210
      %s236 = sphi 0, %s238
      %s239 = sphi 0, %s236
      %s240 = sphi 0, %s239
      %s256 = sphi 0, %s240
      %s266 = sphi 0, %s268
      %s269 = sphi 0, %s266
      %s270 = sphi 0, %s269
      %s286 = sphi 0, %s270
      %s296 = sphi 0, %s298
      %s299 = sphi 0, %s296
      %s300 = sphi 0, %s299
      %s316 = sphi 0, %s300
      %s326 = sphi 0, %s328
      %s329 = sphi 0, %s326
      %s330 = sphi 0, %s329
      %s346 = sphi 0, %s330
      %s356 = sphi 0, %s358
      %s359 = sphi 0, %s356
      %s360 = sphi 0, %s359
      %s376 = sphi 0, %s360
      %s386 = sphi 0, %s388
      %s389 = sphi 0, %s386
      %s390 = sphi 0, %s389
      %s406 = sphi 0, %s390
      %s416 = sphi 0, %s418
      %s419 = sphi 0, %s416
      %s420 = sphi 0, %s419
      %s436 = sphi 0, %s420
      %s446 = sphi 0, %s448
      %s449 = sphi 0, %s446
      %s450 = sphi 0, %s449
      %s466 = sphi 0, %s450
      %s472 = sphi 0, %s474
      %s475 = sphi 0, %s472
      %s476 = sphi 0, %s475
      %s492 = sphi 0, %s476
    $region4: #{tpu_custom_call.1} parent=1 // loop_header_branch
      %37 = sbr.rel (%p35) target = $region8
    $region5: #{tpu_custom_call.1} parent=1 // loop_body
      %s39 = ssub.s32 %s34, 1
      %s40 = ssub.s32 %s34, 2
      %s47 = sadd.s32 1, %s42
      %p48 = scmp.ge.s32.totalorder %s47, 3
      %s49 = scalar_select %p48, 0, %s47
      %s50 = sadd.s32 1, %s41
      %s51 = scalar_select %p48, %s50, %s41
      %p52 = scmp.ge.s32.totalorder %s51, 1
      %s53 = scalar_select %p52, 0, %s51
      %s54 = ssub.s32 %s41, %s53
      %p55 = scmp.eq.s32.totalorder %s54, 0
      %s57 = sadd.s32 %s56, 1
      %s58 = scalar_select %p55, %s56, %s57
      %p61 = pneg %p55
      %p62 = scmp.eq.s32.totalorder %s34, 2
      %p63 = por %p61, %p62
      %p64 = scmp.ne.s32.totalorder %s56, %s59
      %p65 = scmp.eq.s32.totalorder %s34, 0
      %p66 = por %p64, %p65
      %p67 = scmp.ne.s32.totalorder %s56, %s59
      %p68 = scmp.eq.s32.totalorder %s39, 2
      %p69 = por %p67, %p68
      %p70 = scmp.ne.s32.totalorder %s59, %s60
      %p71 = scmp.eq.s32.totalorder %s39, 0
      %p72 = por %p70, %p71
      %p73 = scmp.ne.s32.totalorder %s59, %s60
      %p74 = scmp.eq.s32.totalorder %s40, 2
      %p75 = por %p73, %p74
      %p77 = scmp.ne.s32.totalorder %s60, %s76
      %p78 = scmp.eq.s32.totalorder %s40, 0
      %p79 = por %p77, %p78
      %p80 = scmp.lt.s32.totalorder %s42, 1
      %s81 = scalar_select %p80, %s42, 1
      %p82 = scmp.lt.s32.totalorder %s49, 1
      %s83 = scalar_select %p82, %s49, 1
      %s84 = ssub.s32 %s81, %s83
      %p85 = scmp.eq.s32.totalorder %s84, 0
      %s87 = sadd.s32 %s86, 1
      %s88 = scalar_select %p85, %s86, %s87
      %p91 = pneg %p85
      %p92 = scmp.eq.s32.totalorder %s34, 2
      %p93 = por %p91, %p92
      %p94 = scmp.ne.s32.totalorder %s86, %s89
      %p95 = scmp.eq.s32.totalorder %s34, 0
      %p96 = por %p94, %p95
      %p97 = scmp.ne.s32.totalorder %s86, %s89
      %p98 = scmp.eq.s32.totalorder %s39, 2
      %p99 = por %p97, %p98
      %p100 = scmp.ne.s32.totalorder %s89, %s90
      %p101 = scmp.eq.s32.totalorder %s39, 0
      %p102 = por %p100, %p101
      %p103 = scmp.ne.s32.totalorder %s89, %s90
      %p104 = scmp.eq.s32.totalorder %s40, 2
      %p105 = por %p103, %p104
      %p107 = scmp.ne.s32.totalorder %s90, %s106
      %p108 = scmp.eq.s32.totalorder %s40, 0
      %p109 = por %p107, %p108
      %p110 = scmp.lt.s32.totalorder %s42, 1
      %s111 = scalar_select %p110, %s42, 1
      %p112 = scmp.lt.s32.totalorder %s49, 1
      %s113 = scalar_select %p112, %s49, 1
      %s114 = ssub.s32 %s111, %s113
      %p115 = scmp.eq.s32.totalorder %s114, 0
      %s117 = sadd.s32 %s116, 1
      %s118 = scalar_select %p115, %s116, %s117
      %p121 = pneg %p115
      %p122 = scmp.eq.s32.totalorder %s34, 2
      %p123 = por %p121, %p122
      %p124 = scmp.ne.s32.totalorder %s116, %s119
      %p125 = scmp.eq.s32.totalorder %s34, 0
      %p126 = por %p124, %p125
      %p127 = scmp.ne.s32.totalorder %s116, %s119
      %p128 = scmp.eq.s32.totalorder %s39, 2
      %p129 = por %p127, %p128
      %p130 = scmp.ne.s32.totalorder %s119, %s120
      %p131 = scmp.eq.s32.totalorder %s39, 0
      %p132 = por %p130, %p131
      %p133 = scmp.ne.s32.totalorder %s119, %s120
      %p134 = scmp.eq.s32.totalorder %s40, 2
      %p135 = por %p133, %p134
      %p137 = scmp.ne.s32.totalorder %s120, %s136
      %p138 = scmp.eq.s32.totalorder %s40, 0
      %p139 = por %p137, %p138
      %p140 = scmp.lt.s32.totalorder %s42, 1
      %s141 = scalar_select %p140, %s42, 1
      %p142 = scmp.lt.s32.totalorder %s49, 1
      %s143 = scalar_select %p142, %s49, 1
      %s144 = ssub.s32 %s141, %s143
      %p145 = scmp.eq.s32.totalorder %s144, 0
      %s147 = sadd.s32 %s146, 1
      %s148 = scalar_select %p145, %s146, %s147
      %p151 = pneg %p145
      %p152 = scmp.eq.s32.totalorder %s34, 2
      %p153 = por %p151, %p152
      %p154 = scmp.ne.s32.totalorder %s146, %s149
      %p155 = scmp.eq.s32.totalorder %s34, 0
      %p156 = por %p154, %p155
      %p157 = scmp.ne.s32.totalorder %s146, %s149
      %p158 = scmp.eq.s32.totalorder %s39, 2
      %p159 = por %p157, %p158
      %p160 = scmp.ne.s32.totalorder %s149, %s150
      %p161 = scmp.eq.s32.totalorder %s39, 0
      %p162 = por %p160, %p161
      %p163 = scmp.ne.s32.totalorder %s149, %s150
      %p164 = scmp.eq.s32.totalorder %s40, 2
      %p165 = por %p163, %p164
      %p167 = scmp.ne.s32.totalorder %s150, %s166
      %p168 = scmp.eq.s32.totalorder %s40, 0
      %p169 = por %p167, %p168
      %p170 = scmp.lt.s32.totalorder %s42, 1
      %s171 = scalar_select %p170, %s42, 1
      %p172 = scmp.lt.s32.totalorder %s49, 1
      %s173 = scalar_select %p172, %s49, 1
      %s174 = ssub.s32 %s171, %s173
      %p175 = scmp.eq.s32.totalorder %s174, 0
      %s177 = sadd.s32 %s176, 1
      %s178 = scalar_select %p175, %s176, %s177
      %p181 = pneg %p175
      %p182 = scmp.eq.s32.totalorder %s34, 2
      %p183 = por %p181, %p182
      %p184 = scmp.ne.s32.totalorder %s176, %s179
      %p185 = scmp.eq.s32.totalorder %s34, 0
      %p186 = por %p184, %p185
      %p187 = scmp.ne.s32.totalorder %s176, %s179
      %p188 = scmp.eq.s32.totalorder %s39, 2
      %p189 = por %p187, %p188
      %p190 = scmp.ne.s32.totalorder %s179, %s180
      %p191 = scmp.eq.s32.totalorder %s39, 0
      %p192 = por %p190, %p191
      %p193 = scmp.ne.s32.totalorder %s179, %s180
      %p194 = scmp.eq.s32.totalorder %s40, 2
      %p195 = por %p193, %p194
      %p197 = scmp.ne.s32.totalorder %s180, %s196
      %p198 = scmp.eq.s32.totalorder %s40, 0
      %p199 = por %p197, %p198
      %p200 = scmp.lt.s32.totalorder %s42, 1
      %s201 = scalar_select %p200, %s42, 1
      %p202 = scmp.lt.s32.totalorder %s49, 1
      %s203 = scalar_select %p202, %s49, 1
      %s204 = ssub.s32 %s201, %s203
      %p205 = scmp.eq.s32.totalorder %s204, 0
      %s207 = sadd.s32 %s206, 1
      %s208 = scalar_select %p205, %s206, %s207
      %p211 = pneg %p205
      %p212 = scmp.eq.s32.totalorder %s34, 2
      %p213 = por %p211, %p212
      %p214 = scmp.ne.s32.totalorder %s206, %s209
      %p215 = scmp.eq.s32.totalorder %s34, 0
      %p216 = por %p214, %p215
      %p217 = scmp.ne.s32.totalorder %s206, %s209
      %p218 = scmp.eq.s32.totalorder %s39, 2
      %p219 = por %p217, %p218
      %p220 = scmp.ne.s32.totalorder %s209, %s210
      %p221 = scmp.eq.s32.totalorder %s39, 0
      %p222 = por %p220, %p221
      %p223 = scmp.ne.s32.totalorder %s209, %s210
      %p224 = scmp.eq.s32.totalorder %s40, 2
      %p225 = por %p223, %p224
      %p227 = scmp.ne.s32.totalorder %s210, %s226
      %p228 = scmp.eq.s32.totalorder %s40, 0
      %p229 = por %p227, %p228
      %p230 = scmp.lt.s32.totalorder %s42, 1
      %s231 = scalar_select %p230, %s42, 1
      %p232 = scmp.lt.s32.totalorder %s49, 1
      %s233 = scalar_select %p232, %s49, 1
      %s234 = ssub.s32 %s231, %s233
      %p235 = scmp.eq.s32.totalorder %s234, 0
      %s237 = sadd.s32 %s236, 1
      %s238 = scalar_select %p235, %s236, %s237
      %p241 = pneg %p235
      %p242 = scmp.eq.s32.totalorder %s34, 2
      %p243 = por %p241, %p242
      %p244 = scmp.ne.s32.totalorder %s236, %s239
      %p245 = scmp.eq.s32.totalorder %s34, 0
      %p246 = por %p244, %p245
      %p247 = scmp.ne.s32.totalorder %s236, %s239
      %p248 = scmp.eq.s32.totalorder %s39, 2
      %p249 = por %p247, %p248
      %p250 = scmp.ne.s32.totalorder %s239, %s240
      %p251 = scmp.eq.s32.totalorder %s39, 0
      %p252 = por %p250, %p251
      %p253 = scmp.ne.s32.totalorder %s239, %s240
      %p254 = scmp.eq.s32.totalorder %s40, 2
      %p255 = por %p253, %p254
      %p257 = scmp.ne.s32.totalorder %s240, %s256
      %p258 = scmp.eq.s32.totalorder %s40, 0
      %p259 = por %p257, %p258
      %p260 = scmp.lt.s32.totalorder %s42, 1
      %s261 = scalar_select %p260, %s42, 1
      %p262 = scmp.lt.s32.totalorder %s49, 1
      %s263 = scalar_select %p262, %s49, 1
      %s264 = ssub.s32 %s261, %s263
      %p265 = scmp.eq.s32.totalorder %s264, 0
      %s267 = sadd.s32 %s266, 1
      %s268 = scalar_select %p265, %s266, %s267
      %p271 = pneg %p265
      %p272 = scmp.eq.s32.totalorder %s34, 2
      %p273 = por %p271, %p272
      %p274 = scmp.ne.s32.totalorder %s266, %s269
      %p275 = scmp.eq.s32.totalorder %s34, 0
      %p276 = por %p274, %p275
      %p277 = scmp.ne.s32.totalorder %s266, %s269
      %p278 = scmp.eq.s32.totalorder %s39, 2
      %p279 = por %p277, %p278
      %p280 = scmp.ne.s32.totalorder %s269, %s270
      %p281 = scmp.eq.s32.totalorder %s39, 0
      %p282 = por %p280, %p281
      %p283 = scmp.ne.s32.totalorder %s269, %s270
      %p284 = scmp.eq.s32.totalorder %s40, 2
      %p285 = por %p283, %p284
      %p287 = scmp.ne.s32.totalorder %s270, %s286
      %p288 = scmp.eq.s32.totalorder %s40, 0
      %p289 = por %p287, %p288
      %p290 = scmp.lt.s32.totalorder %s42, 1
      %s291 = scalar_select %p290, %s42, 1
      %p292 = scmp.lt.s32.totalorder %s49, 1
      %s293 = scalar_select %p292, %s49, 1
      %s294 = ssub.s32 %s291, %s293
      %p295 = scmp.eq.s32.totalorder %s294, 0
      %s297 = sadd.s32 %s296, 1
      %s298 = scalar_select %p295, %s296, %s297
      %p301 = pneg %p295
      %p302 = scmp.eq.s32.totalorder %s34, 2
      %p303 = por %p301, %p302
      %p304 = scmp.ne.s32.totalorder %s296, %s299
      %p305 = scmp.eq.s32.totalorder %s34, 0
      %p306 = por %p304, %p305
      %p307 = scmp.ne.s32.totalorder %s296, %s299
      %p308 = scmp.eq.s32.totalorder %s39, 2
      %p309 = por %p307, %p308
      %p310 = scmp.ne.s32.totalorder %s299, %s300
      %p311 = scmp.eq.s32.totalorder %s39, 0
      %p312 = por %p310, %p311
      %p313 = scmp.ne.s32.totalorder %s299, %s300
      %p314 = scmp.eq.s32.totalorder %s40, 2
      %p315 = por %p313, %p314
      %p317 = scmp.ne.s32.totalorder %s300, %s316
      %p318 = scmp.eq.s32.totalorder %s40, 0
      %p319 = por %p317, %p318
      %p320 = scmp.lt.s32.totalorder %s42, 1
      %s321 = scalar_select %p320, %s42, 1
      %p322 = scmp.lt.s32.totalorder %s49, 1
      %s323 = scalar_select %p322, %s49, 1
      %s324 = ssub.s32 %s321, %s323
      %p325 = scmp.eq.s32.totalorder %s324, 0
      %s327 = sadd.s32 %s326, 1
      %s328 = scalar_select %p325, %s326, %s327
      %p331 = pneg %p325
      %p332 = scmp.eq.s32.totalorder %s34, 2
      %p333 = por %p331, %p332
      %p334 = scmp.ne.s32.totalorder %s326, %s329
      %p335 = scmp.eq.s32.totalorder %s34, 0
      %p336 = por %p334, %p335
      %p337 = scmp.ne.s32.totalorder %s326, %s329
      %p338 = scmp.eq.s32.totalorder %s39, 2
      %p339 = por %p337, %p338
      %p340 = scmp.ne.s32.totalorder %s329, %s330
      %p341 = scmp.eq.s32.totalorder %s39, 0
      %p342 = por %p340, %p341
      %p343 = scmp.ne.s32.totalorder %s329, %s330
      %p344 = scmp.eq.s32.totalorder %s40, 2
      %p345 = por %p343, %p344
      %p347 = scmp.ne.s32.totalorder %s330, %s346
      %p348 = scmp.eq.s32.totalorder %s40, 0
      %p349 = por %p347, %p348
      %p350 = scmp.lt.s32.totalorder %s42, 1
      %s351 = scalar_select %p350, %s42, 1
      %p352 = scmp.lt.s32.totalorder %s49, 1
      %s353 = scalar_select %p352, %s49, 1
      %s354 = ssub.s32 %s351, %s353
      %p355 = scmp.eq.s32.totalorder %s354, 0
      %s357 = sadd.s32 %s356, 1
      %s358 = scalar_select %p355, %s356, %s357
      %p361 = pneg %p355
      %p362 = scmp.eq.s32.totalorder %s34, 2
      %p363 = por %p361, %p362
      %p364 = scmp.ne.s32.totalorder %s356, %s359
      %p365 = scmp.eq.s32.totalorder %s34, 0
      %p366 = por %p364, %p365
      %p367 = scmp.ne.s32.totalorder %s356, %s359
      %p368 = scmp.eq.s32.totalorder %s39, 2
      %p369 = por %p367, %p368
      %p370 = scmp.ne.s32.totalorder %s359, %s360
      %p371 = scmp.eq.s32.totalorder %s39, 0
      %p372 = por %p370, %p371
      %p373 = scmp.ne.s32.totalorder %s359, %s360
      %p374 = scmp.eq.s32.totalorder %s40, 2
      %p375 = por %p373, %p374
      %p377 = scmp.ne.s32.totalorder %s360, %s376
      %p378 = scmp.eq.s32.totalorder %s40, 0
      %p379 = por %p377, %p378
      %p380 = scmp.lt.s32.totalorder %s42, 1
      %s381 = scalar_select %p380, %s42, 1
      %p382 = scmp.lt.s32.totalorder %s49, 1
      %s383 = scalar_select %p382, %s49, 1
      %s384 = ssub.s32 %s381, %s383
      %p385 = scmp.eq.s32.totalorder %s384, 0
      %s387 = sadd.s32 %s386, 1
      %s388 = scalar_select %p385, %s386, %s387
      %p391 = pneg %p385
      %p392 = scmp.eq.s32.totalorder %s34, 2
      %p393 = por %p391, %p392
      %p394 = scmp.ne.s32.totalorder %s386, %s389
      %p395 = scmp.eq.s32.totalorder %s34, 0
      %p396 = por %p394, %p395
      %p397 = scmp.ne.s32.totalorder %s386, %s389
      %p398 = scmp.eq.s32.totalorder %s39, 2
      %p399 = por %p397, %p398
      %p400 = scmp.ne.s32.totalorder %s389, %s390
      %p401 = scmp.eq.s32.totalorder %s39, 0
      %p402 = por %p400, %p401
      %p403 = scmp.ne.s32.totalorder %s389, %s390
      %p404 = scmp.eq.s32.totalorder %s40, 2
      %p405 = por %p403, %p404
      %p407 = scmp.ne.s32.totalorder %s390, %s406
      %p408 = scmp.eq.s32.totalorder %s40, 0
      %p409 = por %p407, %p408
      %p410 = scmp.lt.s32.totalorder %s42, 1
      %s411 = scalar_select %p410, %s42, 1
      %p412 = scmp.lt.s32.totalorder %s49, 1
      %s413 = scalar_select %p412, %s49, 1
      %s414 = ssub.s32 %s411, %s413
      %p415 = scmp.eq.s32.totalorder %s414, 0
      %s417 = sadd.s32 %s416, 1
      %s418 = scalar_select %p415, %s416, %s417
      %p421 = pneg %p415
      %p422 = scmp.eq.s32.totalorder %s34, 2
      %p423 = por %p421, %p422
      %p424 = scmp.ne.s32.totalorder %s416, %s419
      %p425 = scmp.eq.s32.totalorder %s34, 0
      %p426 = por %p424, %p425
      %p427 = scmp.ne.s32.totalorder %s416, %s419
      %p428 = scmp.eq.s32.totalorder %s39, 2
      %p429 = por %p427, %p428
      %p430 = scmp.ne.s32.totalorder %s419, %s420
      %p431 = scmp.eq.s32.totalorder %s39, 0
      %p432 = por %p430, %p431
      %p433 = scmp.ne.s32.totalorder %s419, %s420
      %p434 = scmp.eq.s32.totalorder %s40, 2
      %p435 = por %p433, %p434
      %p437 = scmp.ne.s32.totalorder %s420, %s436
      %p438 = scmp.eq.s32.totalorder %s40, 0
      %p439 = por %p437, %p438
      %p440 = scmp.lt.s32.totalorder %s42, 1
      %s441 = scalar_select %p440, %s42, 1
      %p442 = scmp.lt.s32.totalorder %s49, 1
      %s443 = scalar_select %p442, %s49, 1
      %s444 = ssub.s32 %s441, %s443
      %p445 = scmp.eq.s32.totalorder %s444, 0
      %s447 = sadd.s32 %s446, 1
      %s448 = scalar_select %p445, %s446, %s447
      %p451 = pneg %p445
      %p452 = scmp.eq.s32.totalorder %s34, 2
      %p453 = por %p451, %p452
      %p454 = scmp.ne.s32.totalorder %s446, %s449
      %p455 = scmp.eq.s32.totalorder %s34, 0
      %p456 = por %p454, %p455
      %p457 = scmp.ne.s32.totalorder %s446, %s449
      %p458 = scmp.eq.s32.totalorder %s39, 2
      %p459 = por %p457, %p458
      %p460 = scmp.ne.s32.totalorder %s449, %s450
      %p461 = scmp.eq.s32.totalorder %s39, 0
      %p462 = por %p460, %p461
      %p463 = scmp.ne.s32.totalorder %s449, %s450
      %p464 = scmp.eq.s32.totalorder %s40, 2
      %p465 = por %p463, %p464
      %p467 = scmp.ne.s32.totalorder %s450, %s466
      %p468 = scmp.eq.s32.totalorder %s40, 0
      %p469 = por %p467, %p468
      %s470 = ssub.s32 %s41, %s53
      %p471 = scmp.eq.s32.totalorder %s470, 0
      %s473 = sadd.s32 %s472, 1
      %s474 = scalar_select %p471, %s472, %s473
      %p477 = pneg %p471
      %p478 = scmp.eq.s32.totalorder %s34, 2
      %p479 = por %p477, %p478
      %p480 = scmp.ne.s32.totalorder %s472, %s475
      %p481 = scmp.eq.s32.totalorder %s34, 0
      %p482 = por %p480, %p481
      %p483 = scmp.ne.s32.totalorder %s472, %s475
      %p484 = scmp.eq.s32.totalorder %s39, 2
      %p485 = por %p483, %p484
      %p486 = scmp.ne.s32.totalorder %s475, %s476
      %p487 = scmp.eq.s32.totalorder %s39, 0
      %p488 = por %p486, %p487
      %p489 = scmp.ne.s32.totalorder %s475, %s476
      %p490 = scmp.eq.s32.totalorder %s40, 2
      %p491 = por %p489, %p490
      %p493 = scmp.ne.s32.totalorder %s476, %s492
      %p494 = scmp.eq.s32.totalorder %s40, 0
      %p495 = por %p493, %p494
      %p496 = scmp.le.s32.totalorder 1, %s34
      %p497 = scmp.lt.s32.totalorder %s34, 4
      %p498 = pnand %p496, %p497
      %p499 = pneg %p498
      // Predicated region
      $region9: #{tpu_custom_call.1} parent=5 // pred_check
        _
      $region10: #{tpu_custom_call.1} parent=5 // pred_check_branch
        %501 = sbr.rel (%p498) target = $region12
      $region11: #{tpu_custom_call.1} parent=5 // pred_region
        %s502 = ssub.s32 %s34, 1
        // Predicated region
        $region13: #{tpu_custom_call.1} parent=11 // pred_check
          %p503 = pneg %p72
        $region14: #{tpu_custom_call.1} parent=11 // pred_check_branch
          %505 = sbr.rel (%p503) target = $region16
        $region15: #{tpu_custom_call.1} parent=11 // pred_region
          %s506 = smul.u32 2, %s43
          %508 = vsyncadd [#allocation3], 0
          %s509 = smul.addr %s506, 8
          %s510 = scalar_lea.hbm %s0, %s509
          %s511 = sshll.u32 %s510, 4
          %s512 = int_to_ptr.hbm [resolvable:$true] %s511
          %s513 = sshll.u32 [#allocation2], 4
          %s514 = int_to_ptr.vmem [resolvable:$true] %s513
          %519 = dma.hbm_to_vmem [thread:$0]  %s512, 256, %s514, [#allocation3], 128, 128, 8
        $region16: #{tpu_custom_call.1} parent=11 // pred_fallthru
          _
      $region12: #{tpu_custom_call.1} parent=5 // pred_fallthru
        _
      %p520 = scmp.lt.s32.totalorder %s34, 3
      // Predicated region
      $region17: #{tpu_custom_call.1} parent=5 // pred_check
        %p521 = pneg %p520
      $region18: #{tpu_custom_call.1} parent=5 // pred_check_branch
        %523 = sbr.rel (%p521) target = $region20
      $region19: #{tpu_custom_call.1} parent=5 // pred_region
        // Predicated region
        $region21: #{tpu_custom_call.1} parent=19 // pred_check
          %p524 = pneg %p96
        $region22: #{tpu_custom_call.1} parent=19 // pred_check_branch
          %526 = sbr.rel (%p524) target = $region24
        $region23: #{tpu_custom_call.1} parent=19 // pred_region
          %s527 = sand.u32 %s34, 1
          %s528 = scalar_lea.sflag [#allocation6], %s527
          %s529 = sand.u32 %s86, 1
          %s530 = smul.addr %s529, 384
          %s531 = scalar_lea.vmem [#allocation5], %s530
          %p532 = scmp.lt.s32.totalorder %s42, 1
          %s533 = scalar_select %p532, %s42, 1
          %535 = vsyncadd %s528, 0
          %s536 = smul.addr %s533, 48
          %s537 = smul.addr %s536, 8
          %s538 = scalar_lea.hbm %s1, %s537
          %s539 = sshll.u32 %s538, 4
          %s540 = int_to_ptr.hbm [resolvable:$true] %s539
          %s541 = sshll.u32 %s531, 4
          %s542 = int_to_ptr.vmem [resolvable:$true] %s541
          %547 = dma.hbm_to_vmem [thread:$0]  %s540, 6144, %s542, %s528, 384, 384, 24
        $region24: #{tpu_custom_call.1} parent=19 // pred_fallthru
          _
        // Predicated region
        $region25: #{tpu_custom_call.1} parent=19 // pred_check
          %p548 = pneg %p126
        $region26: #{tpu_custom_call.1} parent=19 // pred_check_branch
          %550 = sbr.rel (%p548) target = $region28
        $region27: #{tpu_custom_call.1} parent=19 // pred_region
          %s551 = sand.u32 %s34, 1
          %s552 = scalar_lea.sflag [#allocation6], %s551
          %s553 = sand.u32 %s116, 1
          %s554 = smul.addr %s553, 3
          %s555 = scalar_lea.vmem [#allocation7], %s554
          %p556 = scmp.lt.s32.totalorder %s42, 1
          %s557 = scalar_select %p556, %s42, 1
          %559 = vsyncadd %s552, 0
          %s560 = smul.addr %s557, 3
          %s561 = scalar_lea.hbm %s2, %s560
          %s563 = sshll.u32 %s561, 4
          %s564 = int_to_ptr.hbm [resolvable:$true] %s563
          %s565 = sshll.u32 %s555, 4
          %s566 = int_to_ptr.vmem [resolvable:$true] %s565
          %568 = dma.hbm_to_vmem [thread:$0]  %s564, 48, %s566, %s552
        $region28: #{tpu_custom_call.1} parent=19 // pred_fallthru
          _
        // Predicated region
        $region29: #{tpu_custom_call.1} parent=19 // pred_check
          %p569 = pneg %p156
        $region30: #{tpu_custom_call.1} parent=19 // pred_check_branch
          %571 = sbr.rel (%p569) target = $region32
        $region31: #{tpu_custom_call.1} parent=19 // pred_region
          %s572 = sand.u32 %s34, 1
          %s573 = scalar_lea.sflag [#allocation9], %s572
          %s574 = sand.u32 %s146, 1
          %s575 = smul.addr %s574, 128
          %s576 = scalar_lea.vmem [#allocation8], %s575
          %p577 = scmp.lt.s32.totalorder %s42, 1
          %s578 = scalar_select %p577, %s42, 1
          %580 = vsyncadd %s573, 0
          %s581 = smul.addr %s578, 16
          %s582 = smul.addr %s581, 8
          %s583 = scalar_lea.hbm %s3, %s582
          %s584 = sshll.u32 %s583, 4
          %s585 = int_to_ptr.hbm [resolvable:$true] %s584
          %s586 = sshll.u32 %s576, 4
          %s587 = int_to_ptr.vmem [resolvable:$true] %s586
          %592 = dma.hbm_to_vmem [thread:$0]  %s585, 2048, %s587, %s573, 128, 128, 8
        $region32: #{tpu_custom_call.1} parent=19 // pred_fallthru
          _
        // Predicated region
        $region33: #{tpu_custom_call.1} parent=19 // pred_check
          %p593 = pneg %p186
        $region34: #{tpu_custom_call.1} parent=19 // pred_check_branch
          %595 = sbr.rel (%p593) target = $region36
        $region35: #{tpu_custom_call.1} parent=19 // pred_region
          %p596 = scmp.lt.s32.totalorder %s42, 1
          %s597 = scalar_select %p596, %s42, 1
          %p598 = scmp.lt.s32.totalorder %s597, 1
          %s599 = scalar_select %p598, %s597, 1
          %s600 = scalar_lea.vmem %s4, %s599
          %p601 = scmp.lt.s32.totalorder %s42, 1
          %s602 = scalar_select %p601, %s42, 1
        $region36: #{tpu_custom_call.1} parent=19 // pred_fallthru
          _
        // Predicated region
        $region37: #{tpu_custom_call.1} parent=19 // pred_check
          %p603 = pneg %p216
        $region38: #{tpu_custom_call.1} parent=19 // pred_check_branch
          %605 = sbr.rel (%p603) target = $region40
        $region39: #{tpu_custom_call.1} parent=19 // pred_region
          %s606 = sand.u32 %s34, 1
          %s607 = scalar_lea.sflag [#allocation9], %s606
          %s608 = sand.u32 %s206, 1
          %s609 = scalar_lea.vmem [#allocation10], %s608
          %p610 = scmp.lt.s32.totalorder %s42, 1
          %s611 = scalar_select %p610, %s42, 1
          %613 = vsyncadd %s607, 0
          %s614 = scalar_lea.hbm %s5, %s611
          %s616 = sshll.u32 %s614, 4
          %s617 = int_to_ptr.hbm [resolvable:$true] %s616
          %s618 = sshll.u32 %s609, 4
          %s619 = int_to_ptr.vmem [resolvable:$true] %s618
          %621 = dma.hbm_to_vmem [thread:$0]  %s617, 16, %s619, %s607
        $region40: #{tpu_custom_call.1} parent=19 // pred_fallthru
          _
        // Predicated region
        $region41: #{tpu_custom_call.1} parent=19 // pred_check
          %p622 = pneg %p246
        $region42: #{tpu_custom_call.1} parent=19 // pred_check_branch
          %624 = sbr.rel (%p622) target = $region44
        $region43: #{tpu_custom_call.1} parent=19 // pred_region
          %s625 = sand.u32 %s34, 1
          %s626 = scalar_lea.sflag [#allocation12], %s625
          %s627 = sand.u32 %s236, 1
          %s628 = scalar_lea.vmem [#allocation11], %s627
          %p629 = scmp.lt.s32.totalorder %s42, 1
          %s630 = scalar_select %p629, %s42, 1
          %632 = vsyncadd %s626, 0
          %s633 = scalar_lea.hbm %s6, %s630
          %s635 = sshll.u32 %s633, 4
          %s636 = int_to_ptr.hbm [resolvable:$true] %s635
          %s637 = sshll.u32 %s628, 4
          %s638 = int_to_ptr.vmem [resolvable:$true] %s637
          %640 = dma.hbm_to_vmem [thread:$0]  %s636, 16, %s638, %s626
        $region44: #{tpu_custom_call.1} parent=19 // pred_fallthru
          _
        // Predicated region
        $region45: #{tpu_custom_call.1} parent=19 // pred_check
          %p641 = pneg %p276
        $region46: #{tpu_custom_call.1} parent=19 // pred_check_branch
          %643 = sbr.rel (%p641) target = $region48
        $region47: #{tpu_custom_call.1} parent=19 // pred_region
          %s644 = sand.u32 %s34, 1
          %s645 = scalar_lea.sflag [#allocation12], %s644
          %s646 = sand.u32 %s266, 1
          %s647 = scalar_lea.vmem [#allocation13], %s646
          %p648 = scmp.lt.s32.totalorder %s42, 1
          %s649 = scalar_select %p648, %s42, 1
          %651 = vsyncadd %s645, 0
          %s652 = scalar_lea.hbm %s7, %s649
          %s654 = sshll.u32 %s652, 4
          %s655 = int_to_ptr.hbm [resolvable:$true] %s654
          %s656 = sshll.u32 %s647, 4
          %s657 = int_to_ptr.vmem [resolvable:$true] %s656
          %659 = dma.hbm_to_vmem [thread:$0]  %s655, 16, %s657, %s645
        $region48: #{tpu_custom_call.1} parent=19 // pred_fallthru
          _
        // Predicated region
        $region49: #{tpu_custom_call.1} parent=19 // pred_check
          %p660 = pneg %p306
        $region50: #{tpu_custom_call.1} parent=19 // pred_check_branch
          %662 = sbr.rel (%p660) target = $region52
        $region51: #{tpu_custom_call.1} parent=19 // pred_region
          %s663 = sand.u32 %s34, 1
          %s664 = scalar_lea.sflag [#allocation15], %s663
          %s665 = sand.u32 %s296, 1
          %s666 = smul.addr %s665, 256
          %s667 = scalar_lea.vmem [#allocation14], %s666
          %p668 = scmp.lt.s32.totalorder %s42, 1
          %s669 = scalar_select %p668, %s42, 1
          %671 = vsyncadd %s664, 0
          %s672 = smul.addr %s669, 32
          %s673 = smul.addr %s672, 8
          %s674 = scalar_lea.hbm %s8, %s673
          %s675 = sshll.u32 %s674, 4
          %s676 = int_to_ptr.hbm [resolvable:$true] %s675
          %s677 = sshll.u32 %s667, 4
          %s678 = int_to_ptr.vmem [resolvable:$true] %s677
          %683 = dma.hbm_to_vmem [thread:$0]  %s676, 4096, %s678, %s664, 256, 256, 16
        $region52: #{tpu_custom_call.1} parent=19 // pred_fallthru
          _
        // Predicated region
        $region53: #{tpu_custom_call.1} parent=19 // pred_check
          %p684 = pneg %p336
        $region54: #{tpu_custom_call.1} parent=19 // pred_check_branch
          %686 = sbr.rel (%p684) target = $region56
        $region55: #{tpu_custom_call.1} parent=19 // pred_region
          %p687 = scmp.lt.s32.totalorder %s42, 1
          %s688 = scalar_select %p687, %s42, 1
          %p689 = scmp.lt.s32.totalorder %s688, 1
          %s690 = scalar_select %p689, %s688, 1
          %s691 = smul.addr %s690, 2
          %s692 = scalar_lea.vmem %s9, %s691
          %p693 = scmp.lt.s32.totalorder %s42, 1
          %s694 = scalar_select %p693, %s42, 1
        $region56: #{tpu_custom_call.1} parent=19 // pred_fallthru
          _
        // Predicated region
        $region57: #{tpu_custom_call.1} parent=19 // pred_check
          %p695 = pneg %p366
        $region58: #{tpu_custom_call.1} parent=19 // pred_check_branch
          %697 = sbr.rel (%p695) target = $region60
        $region59: #{tpu_custom_call.1} parent=19 // pred_region
          %s698 = sand.u32 %s34, 1
          %s699 = scalar_lea.sflag [#allocation15], %s698
          %s700 = sand.u32 %s356, 1
          %s701 = smul.addr %s700, 256
          %s702 = scalar_lea.vmem [#allocation16], %s701
          %p703 = scmp.lt.s32.totalorder %s42, 1
          %s704 = scalar_select %p703, %s42, 1
          %706 = vsyncadd %s699, 0
          %s707 = smul.addr %s704, 32
          %s708 = smul.addr %s707, 8
          %s709 = scalar_lea.hbm %s10, %s708
          %s710 = sshll.u32 %s709, 4
          %s711 = int_to_ptr.hbm [resolvable:$true] %s710
          %s712 = sshll.u32 %s702, 4
          %s713 = int_to_ptr.vmem [resolvable:$true] %s712
          %718 = dma.hbm_to_vmem [thread:$0]  %s711, 4096, %s713, %s699, 128, 128, 8
        $region60: #{tpu_custom_call.1} parent=19 // pred_fallthru
          _
        // Predicated region
        $region61: #{tpu_custom_call.1} parent=19 // pred_check
          %p719 = pneg %p396
        $region62: #{tpu_custom_call.1} parent=19 // pred_check_branch
          %721 = sbr.rel (%p719) target = $region64
        $region63: #{tpu_custom_call.1} parent=19 // pred_region
          %p722 = scmp.lt.s32.totalorder %s42, 1
          %s723 = scalar_select %p722, %s42, 1
          %p724 = scmp.lt.s32.totalorder %s723, 1
          %s725 = scalar_select %p724, %s723, 1
          %s726 = scalar_lea.vmem %s11, %s725
          %p727 = scmp.lt.s32.totalorder %s42, 1
          %s728 = scalar_select %p727, %s42, 1
        $region64: #{tpu_custom_call.1} parent=19 // pred_fallthru
          _
        // Predicated region
        $region65: #{tpu_custom_call.1} parent=19 // pred_check
          %p729 = pneg %p426
        $region66: #{tpu_custom_call.1} parent=19 // pred_check_branch
          %731 = sbr.rel (%p729) target = $region68
        $region67: #{tpu_custom_call.1} parent=19 // pred_region
          %p732 = scmp.lt.s32.totalorder %s42, 1
          %s733 = scalar_select %p732, %s42, 1
          %p734 = scmp.lt.s32.totalorder %s733, 1
          %s735 = scalar_select %p734, %s733, 1
          %s736 = scalar_lea.vmem %s12, %s735
          %p737 = scmp.lt.s32.totalorder %s42, 1
          %s738 = scalar_select %p737, %s42, 1
        $region68: #{tpu_custom_call.1} parent=19 // pred_fallthru
          _
        // Predicated region
        $region69: #{tpu_custom_call.1} parent=19 // pred_check
          %p739 = pneg %p456
        $region70: #{tpu_custom_call.1} parent=19 // pred_check_branch
          %741 = sbr.rel (%p739) target = $region72
        $region71: #{tpu_custom_call.1} parent=19 // pred_region
          %p742 = scmp.lt.s32.totalorder %s42, 1
          %s743 = scalar_select %p742, %s42, 1
          %p744 = scmp.lt.s32.totalorder %s743, 1
          %s745 = scalar_select %p744, %s743, 1
          %s746 = scalar_lea.vmem %s13, %s745
          %p747 = scmp.lt.s32.totalorder %s42, 1
          %s748 = scalar_select %p747, %s42, 1
        $region72: #{tpu_custom_call.1} parent=19 // pred_fallthru
          _
      $region20: #{tpu_custom_call.1} parent=5 // pred_fallthru
        _
      %p749 = scmp.le.s32.totalorder 1, %s34
      %p750 = scmp.lt.s32.totalorder %s34, 4
      %p751 = pnand %p749, %p750
      %p752 = pneg %p751
      // Predicated region
      $region73: #{tpu_custom_call.1} parent=5 // pred_check
        _
      $region74: #{tpu_custom_call.1} parent=5 // pred_check_branch
        %754 = sbr.rel (%p751) target = $region76
      $region75: #{tpu_custom_call.1} parent=5 // pred_region
        %s755 = ssub.s32 %s34, 1
        // Predicated region
        $region77: #{tpu_custom_call.1} parent=75 // pred_check
          %p756 = pneg %p72
        $region78: #{tpu_custom_call.1} parent=75 // pred_check_branch
          %758 = sbr.rel (%p756) target = $region80
        $region79: #{tpu_custom_call.1} parent=75 // pred_region
          %760 = dma.done [#allocation3], 256
        $region80: #{tpu_custom_call.1} parent=75 // pred_fallthru
          _
        %s761 = sand.u32 %s39, 1
        %s762 = scalar_lea.sflag [#allocation6], %s761
        %s763 = sand.u32 %s89, 1
        %s764 = smul.addr %s763, 384
        %s765 = scalar_lea.vmem [#allocation5], %s764
        // Predicated region
        $region81: #{tpu_custom_call.1} parent=75 // pred_check
          %p766 = pneg %p102
        $region82: #{tpu_custom_call.1} parent=75 // pred_check_branch
          %768 = sbr.rel (%p766) target = $region84
        $region83: #{tpu_custom_call.1} parent=75 // pred_region
          %770 = dma.done %s762, 6144
        $region84: #{tpu_custom_call.1} parent=75 // pred_fallthru
          _
        %s771 = sand.u32 %s39, 1
        %s772 = scalar_lea.sflag [#allocation6], %s771
        %s773 = sand.u32 %s119, 1
        %s774 = smul.addr %s773, 3
        %s775 = scalar_lea.vmem [#allocation7], %s774
        // Predicated region
        $region85: #{tpu_custom_call.1} parent=75 // pred_check
          %p776 = pneg %p132
        $region86: #{tpu_custom_call.1} parent=75 // pred_check_branch
          %778 = sbr.rel (%p776) target = $region88
        $region87: #{tpu_custom_call.1} parent=75 // pred_region
          %780 = dma.done %s772, 48
        $region88: #{tpu_custom_call.1} parent=75 // pred_fallthru
          _
        %s781 = sand.u32 %s39, 1
        %s782 = scalar_lea.sflag [#allocation9], %s781
        %s783 = sand.u32 %s149, 1
        %s784 = smul.addr %s783, 128
        %s785 = scalar_lea.vmem [#allocation8], %s784
        // Predicated region
        $region89: #{tpu_custom_call.1} parent=75 // pred_check
          %p786 = pneg %p162
        $region90: #{tpu_custom_call.1} parent=75 // pred_check_branch
          %788 = sbr.rel (%p786) target = $region92
        $region91: #{tpu_custom_call.1} parent=75 // pred_region
          %790 = dma.done %s782, 2048
        $region92: #{tpu_custom_call.1} parent=75 // pred_fallthru
          _
        %s791 = sand.u32 %s39, 1
        %s792 = scalar_lea.sflag [#allocation9], %s791
        %s793 = sand.u32 %s209, 1
        %s794 = scalar_lea.vmem [#allocation10], %s793
        // Predicated region
        $region93: #{tpu_custom_call.1} parent=75 // pred_check
          %p795 = pneg %p222
        $region94: #{tpu_custom_call.1} parent=75 // pred_check_branch
          %797 = sbr.rel (%p795) target = $region96
        $region95: #{tpu_custom_call.1} parent=75 // pred_region
          %799 = dma.done %s792, 16
        $region96: #{tpu_custom_call.1} parent=75 // pred_fallthru
          _
        %s800 = sand.u32 %s39, 1
        %s801 = scalar_lea.sflag [#allocation12], %s800
        %s802 = sand.u32 %s239, 1
        %s803 = scalar_lea.vmem [#allocation11], %s802
        // Predicated region
        $region97: #{tpu_custom_call.1} parent=75 // pred_check
          %p804 = pneg %p252
        $region98: #{tpu_custom_call.1} parent=75 // pred_check_branch
          %806 = sbr.rel (%p804) target = $region100
        $region99: #{tpu_custom_call.1} parent=75 // pred_region
          %808 = dma.done %s801, 16
        $region100: #{tpu_custom_call.1} parent=75 // pred_fallthru
          _
        %s809 = sand.u32 %s39, 1
        %s810 = scalar_lea.sflag [#allocation12], %s809
        %s811 = sand.u32 %s269, 1
        %s812 = scalar_lea.vmem [#allocation13], %s811
        // Predicated region
        $region101: #{tpu_custom_call.1} parent=75 // pred_check
          %p813 = pneg %p282
        $region102: #{tpu_custom_call.1} parent=75 // pred_check_branch
          %815 = sbr.rel (%p813) target = $region104
        $region103: #{tpu_custom_call.1} parent=75 // pred_region
          %817 = dma.done %s810, 16
        $region104: #{tpu_custom_call.1} parent=75 // pred_fallthru
          _
        %s818 = sand.u32 %s39, 1
        %s819 = scalar_lea.sflag [#allocation15], %s818
        %s820 = sand.u32 %s299, 1
        %s821 = smul.addr %s820, 256
        %s822 = scalar_lea.vmem [#allocation14], %s821
        // Predicated region
        $region105: #{tpu_custom_call.1} parent=75 // pred_check
          %p823 = pneg %p312
        $region106: #{tpu_custom_call.1} parent=75 // pred_check_branch
          %825 = sbr.rel (%p823) target = $region108
        $region107: #{tpu_custom_call.1} parent=75 // pred_region
          %827 = dma.done %s819, 4096
        $region108: #{tpu_custom_call.1} parent=75 // pred_fallthru
          _
        %s828 = sand.u32 %s39, 1
        %s829 = scalar_lea.sflag [#allocation15], %s828
        %s830 = sand.u32 %s359, 1
        %s831 = smul.addr %s830, 256
        %s832 = scalar_lea.vmem [#allocation16], %s831
        // Predicated region
        $region109: #{tpu_custom_call.1} parent=75 // pred_check
          %p833 = pneg %p372
        $region110: #{tpu_custom_call.1} parent=75 // pred_check_branch
          %835 = sbr.rel (%p833) target = $region112
        $region111: #{tpu_custom_call.1} parent=75 // pred_region
          %837 = dma.done %s829, 4096
        $region112: #{tpu_custom_call.1} parent=75 // pred_fallthru
          _
        %p838 = pneg %p72
        %p839 = pneg %p69
        %s840 = sand.u32 %s39, 1
        %s841 = scalar_lea.sflag [#allocation6], %s840
        %s842 = sand.u32 %s89, 1
        %s843 = smul.addr %s842, 384
        %s844 = scalar_lea.vmem [#allocation5], %s843
        %p845 = pneg %p102
        %p846 = pneg %p99
        %s847 = sand.u32 %s39, 1
        %s848 = scalar_lea.sflag [#allocation6], %s847
        %s849 = sand.u32 %s119, 1
        %s850 = smul.addr %s849, 3
        %s851 = scalar_lea.vmem [#allocation7], %s850
        %p852 = pneg %p132
        %p853 = pneg %p129
        %s854 = sand.u32 %s39, 1
        %s855 = scalar_lea.sflag [#allocation9], %s854
        %s856 = sand.u32 %s149, 1
        %s857 = smul.addr %s856, 128
        %s858 = scalar_lea.vmem [#allocation8], %s857
        %p859 = pneg %p162
        %p860 = pneg %p159
        %p861 = scmp.lt.s32.totalorder %s44, 1
        %s862 = scalar_select %p861, %s44, 1
        %p863 = scmp.lt.s32.totalorder %s862, 1
        %s864 = scalar_select %p863, %s862, 1
        %s865 = scalar_lea.vmem %s4, %s864
        %p866 = pneg %p192
        %p867 = pneg %p189
        %s868 = sand.u32 %s39, 1
        %s869 = scalar_lea.sflag [#allocation9], %s868
        %s870 = sand.u32 %s209, 1
        %s871 = scalar_lea.vmem [#allocation10], %s870
        %p872 = pneg %p222
        %p873 = pneg %p219
        %s874 = sand.u32 %s39, 1
        %s875 = scalar_lea.sflag [#allocation12], %s874
        %s876 = sand.u32 %s239, 1
        %s877 = scalar_lea.vmem [#allocation11], %s876
        %p878 = pneg %p252
        %p879 = pneg %p249
        %s880 = sand.u32 %s39, 1
        %s881 = scalar_lea.sflag [#allocation12], %s880
        %s882 = sand.u32 %s269, 1
        %s883 = scalar_lea.vmem [#allocation13], %s882
        %p884 = pneg %p282
        %p885 = pneg %p279
        %s886 = sand.u32 %s39, 1
        %s887 = scalar_lea.sflag [#allocation15], %s886
        %s888 = sand.u32 %s299, 1
        %s889 = smul.addr %s888, 256
        %s890 = scalar_lea.vmem [#allocation14], %s889
        %p891 = pneg %p312
        %p892 = pneg %p309
        %p893 = scmp.lt.s32.totalorder %s44, 1
        %s894 = scalar_select %p893, %s44, 1
        %p895 = scmp.lt.s32.totalorder %s894, 1
        %s896 = scalar_select %p895, %s894, 1
        %s897 = smul.addr %s896, 2
        %s898 = scalar_lea.vmem %s9, %s897
        %p899 = pneg %p342
        %p900 = pneg %p339
        %s901 = sand.u32 %s39, 1
        %s902 = scalar_lea.sflag [#allocation15], %s901
        %s903 = sand.u32 %s359, 1
        %s904 = smul.addr %s903, 256
        %s905 = scalar_lea.vmem [#allocation16], %s904
        %p906 = pneg %p372
        %p907 = pneg %p369
        %p908 = scmp.lt.s32.totalorder %s44, 1
        %s909 = scalar_select %p908, %s44, 1
        %p910 = scmp.lt.s32.totalorder %s909, 1
        %s911 = scalar_select %p910, %s909, 1
        %s912 = scalar_lea.vmem %s11, %s911
        %p913 = pneg %p402
        %p914 = pneg %p399
        %p915 = scmp.lt.s32.totalorder %s44, 1
        %s916 = scalar_select %p915, %s44, 1
        %p917 = scmp.lt.s32.totalorder %s916, 1
        %s918 = scalar_select %p917, %s916, 1
        %s919 = scalar_lea.vmem %s12, %s918
        %p920 = pneg %p432
        %p921 = pneg %p429
        %p922 = scmp.lt.s32.totalorder %s44, 1
        %s923 = scalar_select %p922, %s44, 1
        %p924 = scmp.lt.s32.totalorder %s923, 1
        %s925 = scalar_select %p924, %s923, 1
        %s926 = scalar_lea.vmem %s13, %s925
        %p927 = pneg %p462
        %p928 = pneg %p459
        %p929 = pneg %p488
        %p930 = pneg %p485
        %s931 = smul.u32 2, %s43
        %p932 = scmp.lt.s32.totalorder %s44, 1
        %s933 = scalar_select %p932, %s44, 1
        %p934 = scmp.lt.s32.totalorder %s44, 1
        %s935 = scalar_select %p934, %s44, 1
        %p936 = scmp.lt.s32.totalorder %s44, 1
        %s937 = scalar_select %p936, %s44, 1
        %p938 = scmp.lt.s32.totalorder %s44, 1
        %s939 = scalar_select %p938, %s44, 1
        %p940 = scmp.lt.s32.totalorder %s939, 1
        %s941 = scalar_select %p940, %s939, 1
        %s942 = scalar_lea.vmem %s4, %s941
        %p943 = scmp.lt.s32.totalorder %s44, 1
        %s944 = scalar_select %p943, %s44, 1
        %p945 = scmp.lt.s32.totalorder %s44, 1
        %s946 = scalar_select %p945, %s44, 1
        %p947 = scmp.lt.s32.totalorder %s44, 1
        %s948 = scalar_select %p947, %s44, 1
        %p949 = scmp.lt.s32.totalorder %s44, 1
        %s950 = scalar_select %p949, %s44, 1
        %p951 = scmp.lt.s32.totalorder %s44, 1
        %s952 = scalar_select %p951, %s44, 1
        %p953 = scmp.lt.s32.totalorder %s44, 1
        %s954 = scalar_select %p953, %s44, 1
        %p955 = scmp.lt.s32.totalorder %s954, 1
        %s956 = scalar_select %p955, %s954, 1
        %s957 = smul.addr %s956, 2
        %s958 = scalar_lea.vmem %s9, %s957
        %p959 = scmp.lt.s32.totalorder %s44, 1
        %s960 = scalar_select %p959, %s44, 1
        %p961 = scmp.lt.s32.totalorder %s44, 1
        %s962 = scalar_select %p961, %s44, 1
        %p963 = scmp.lt.s32.totalorder %s44, 1
        %s964 = scalar_select %p963, %s44, 1
        %p965 = scmp.lt.s32.totalorder %s964, 1
        %s966 = scalar_select %p965, %s964, 1
        %s967 = scalar_lea.vmem %s11, %s966
        %p968 = scmp.lt.s32.totalorder %s44, 1
        %s969 = scalar_select %p968, %s44, 1
        %p970 = scmp.lt.s32.totalorder %s44, 1
        %s971 = scalar_select %p970, %s44, 1
        %p972 = scmp.lt.s32.totalorder %s971, 1
        %s973 = scalar_select %p972, %s971, 1
        %s974 = scalar_lea.vmem %s12, %s973
        %p975 = scmp.lt.s32.totalorder %s44, 1
        %s976 = scalar_select %p975, %s44, 1
        %p977 = scmp.lt.s32.totalorder %s44, 1
        %s978 = scalar_select %p977, %s44, 1
        %p979 = scmp.lt.s32.totalorder %s978, 1
        %s980 = scalar_select %p979, %s978, 1
        %s981 = scalar_lea.vmem %s13, %s980
        %p982 = scmp.lt.s32.totalorder %s44, 1
        %s983 = scalar_select %p982, %s44, 1
        %s984 = smul.u32 2, %s43
        %p985 = scmp.eq.s32.totalorder %s44, 0
        // Predicated region
        $region113: #{tpu_custom_call.1} parent=75 // pred_check
          %p986 = pneg %p985
        $region114: #{tpu_custom_call.1} parent=75 // pred_check_branch
          %988 = sbr.rel (%p986) target = $region116
        $region115: #{tpu_custom_call.1} parent=75 // pred_region
          %v989 = vld [vmem:[#allocation2] sm:$0xff]
          %v990 = vld [vmem:[#allocation2 + $0x8] sm:$0xff]
          %991 = vst [vmem:[#allocation17] sm:$0xff] %v989
          %992 = vst [vmem:[#allocation17 + $0x8] sm:$0xff] %v990
        $region116: #{tpu_custom_call.1} parent=75 // pred_fallthru
          _
        %v993 = vld [vmem:[%s765] sm:$0xff]
        %v994 = vld [vmem:[%s765 + $0x8] sm:$0xff]
        %v995 = vld [vmem:[%s765 + $0x10] sm:$0xff]
        %v996 = vld [vmem:[%s765 + $0x18] sm:$0xff]
        %v997 = vld [vmem:[%s765 + $0x20] sm:$0xff]
        %v998 = vld [vmem:[%s765 + $0x28] sm:$0xff]
        %v999 = vld [vmem:[%s765 + $0x30] sm:$0xff]
        %v1000 = vld [vmem:[%s765 + $0x38] sm:$0xff]
        %v1001 = vld [vmem:[%s765 + $0x40] sm:$0xff]
        %v1002 = vld [vmem:[%s765 + $0x48] sm:$0xff]
        %v1003 = vld [vmem:[%s765 + $0x50] sm:$0xff]
        %v1004 = vld [vmem:[%s765 + $0x58] sm:$0xff]
        %v1005 = vld [vmem:[%s765 + $0x60] sm:$0xff]
        %v1006 = vld [vmem:[%s765 + $0x68] sm:$0xff]
        %v1007 = vld [vmem:[%s765 + $0x70] sm:$0xff]
        %v1008 = vld [vmem:[%s765 + $0x78] sm:$0xff]
        %v1009 = vld [vmem:[%s765 + $0x80] sm:$0xff]
        %v1010 = vld [vmem:[%s765 + $0x88] sm:$0xff]
        %v1011 = vld [vmem:[%s765 + $0x90] sm:$0xff]
        %v1012 = vld [vmem:[%s765 + $0x98] sm:$0xff]
        %v1013 = vld [vmem:[%s765 + $0xa0] sm:$0xff]
        %v1014 = vld [vmem:[%s765 + $0xa8] sm:$0xff]
        %v1015 = vld [vmem:[%s765 + $0xb0] sm:$0xff]
        %v1016 = vld [vmem:[%s765 + $0xb8] sm:$0xff]
        %v1017 = vld [vmem:[%s765 + $0xc0] sm:$0xff]
        %v1018 = vld [vmem:[%s765 + $0xc8] sm:$0xff]
        %v1019 = vld [vmem:[%s765 + $0xd0] sm:$0xff]
        %v1020 = vld [vmem:[%s765 + $0xd8] sm:$0xff]
        %v1021 = vld [vmem:[%s765 + $0xe0] sm:$0xff]
        %v1022 = vld [vmem:[%s765 + $0xe8] sm:$0xff]
        %v1023 = vld [vmem:[%s765 + $0xf0] sm:$0xff]
        %v1024 = vld [vmem:[%s765 + $0xf8] sm:$0xff]
        %v1025 = vld [vmem:[%s765 + $0x100] sm:$0xff]
        %v1026 = vld [vmem:[%s765 + $0x108] sm:$0xff]
        %v1027 = vld [vmem:[%s765 + $0x110] sm:$0xff]
        %v1028 = vld [vmem:[%s765 + $0x118] sm:$0xff]
        %v1029 = vld [vmem:[%s765 + $0x120] sm:$0xff]
        %v1030 = vld [vmem:[%s765 + $0x128] sm:$0xff]
        %v1031 = vld [vmem:[%s765 + $0x130] sm:$0xff]
        %v1032 = vld [vmem:[%s765 + $0x138] sm:$0xff]
        %v1033 = vld [vmem:[%s765 + $0x140] sm:$0xff]
        %v1034 = vld [vmem:[%s765 + $0x148] sm:$0xff]
        %v1035 = vld [vmem:[%s765 + $0x150] sm:$0xff]
        %v1036 = vld [vmem:[%s765 + $0x158] sm:$0xff]
        %v1037 = vld [vmem:[%s765 + $0x160] sm:$0xff]
        %v1038 = vld [vmem:[%s765 + $0x168] sm:$0xff]
        %v1039 = vld [vmem:[%s765 + $0x170] sm:$0xff]
        %v1040 = vld [vmem:[%s765 + $0x178] sm:$0xff]
        %v1041 = vld [vmem:[#allocation17] sm:$0xff]
        %v1042 = vld [vmem:[#allocation17 + $0x8] sm:$0xff]
        %v1043 = vld [vmem:[%s775] sm:$0x7]
        %v1045 = vperm.slane %v1043, 0
        %v1046 = vperm.slane %v1043, 1
        %v1047 = vperm.slane %v1043, 2
        %1051 = vmatpush.msra.mxu0 %v1038
        %1052 = vmatpush.msra.mxu0 %v1035
        %1053 = vmatpush.msra.mxu0 %v1032
        %1054 = vmatpush.msra.mxu0 %v1029
        %1055 = vmatpush.msra.mxu0 %v1026
        %1056 = vmatpush.msra.mxu0 %v1023
        %1057 = vmatpush.msra.mxu0 %v1020
        %1058 = vmatpush.msra.mxu0 %v1017
        %1059 = vmatpush.msra.mxu0 %v1014
        %1060 = vmatpush.msra.mxu0 %v1011
        %1061 = vmatpush.msra.mxu0 %v1008
        %1062 = vmatpush.msra.mxu0 %v1005
        %1063 = vmatpush.msra.mxu0 %v1002
        %1064 = vmatpush.msra.mxu0 %v999
        %1065 = vmatpush.msra.mxu0 %v996
        %1066 = vmatpush.msra.mxu0 %v993
        %1067 = vmatmul.f32.gmra.mxu0 %v1041
        %v1068 = vpop.f32.mrf.mxu0
        %v1069 = vadd.f32 %v1045, %v1068
        %1070 = vmatmul.f32.gmra.mxu0 %v1042
        %v1071 = vpop.f32.mrf.mxu0
        %v1072 = vadd.f32 %v1045, %v1071
        %1073 = vdwg.mxu0
        %1074 = vmatpush.msra.mxu0 %v1039
        %1075 = vmatpush.msra.mxu0 %v1036
        %1076 = vmatpush.msra.mxu0 %v1033
        %1077 = vmatpush.msra.mxu0 %v1030
        %1078 = vmatpush.msra.mxu0 %v1027
        %1079 = vmatpush.msra.mxu0 %v1024
        %1080 = vmatpush.msra.mxu0 %v1021
        %1081 = vmatpush.msra.mxu0 %v1018
        %1082 = vmatpush.msra.mxu0 %v1015
        %1083 = vmatpush.msra.mxu0 %v1012
        %1084 = vmatpush.msra.mxu0 %v1009
        %1085 = vmatpush.msra.mxu0 %v1006
        %1086 = vmatpush.msra.mxu0 %v1003
        %1087 = vmatpush.msra.mxu0 %v1000
        %1088 = vmatpush.msra.mxu0 %v997
        %1089 = vmatpush.msra.mxu0 %v994
        %1090 = vmatmul.f32.gmra.mxu0 %v1041
        %v1091 = vpop.f32.mrf.mxu0
        %v1092 = vadd.f32 %v1046, %v1091
        %1093 = vmatmul.f32.gmra.mxu0 %v1042
        %v1094 = vpop.f32.mrf.mxu0
        %v1095 = vadd.f32 %v1046, %v1094
        %1096 = vdwg.mxu0
        %1097 = vmatpush.msra.mxu0 %v1040
        %1098 = vmatpush.msra.mxu0 %v1037
        %1099 = vmatpush.msra.mxu0 %v1034
        %1100 = vmatpush.msra.mxu0 %v1031
        %1101 = vmatpush.msra.mxu0 %v1028
        %1102 = vmatpush.msra.mxu0 %v1025
        %1103 = vmatpush.msra.mxu0 %v1022
        %1104 = vmatpush.msra.mxu0 %v1019
        %1105 = vmatpush.msra.mxu0 %v1016
        %1106 = vmatpush.msra.mxu0 %v1013
        %1107 = vmatpush.msra.mxu0 %v1010
        %1108 = vmatpush.msra.mxu0 %v1007
        %1109 = vmatpush.msra.mxu0 %v1004
        %1110 = vmatpush.msra.mxu0 %v1001
        %1111 = vmatpush.msra.mxu0 %v998
        %1112 = vmatpush.msra.mxu0 %v995
        %1113 = vmatmul.f32.gmra.mxu0 %v1041
        %v1114 = vpop.f32.mrf.mxu0
        %v1115 = vadd.f32 %v1047, %v1114
        %1116 = vmatmul.f32.gmra.mxu0 %v1042
        %v1117 = vpop.f32.mrf.mxu0
        %v1118 = vadd.f32 %v1047, %v1117
        %1119 = vdwg.mxu0
        %vm1120 = vcmask 523264
        %v1122 = vsel %vm1120, %v1069, 0
        %v1125 = vsel %vm1120, %v1092, 0
        %1127 = vmatpush.xpose.msra.mxu0 0.0
        %1128 = vmatpush.xpose.msra.mxu0 0.0
        %1129 = vmatpush.xpose.msra.mxu0 0.0
        %1130 = vmatpush.xpose.msra.mxu0 0.0
        %1131 = vmatpush.xpose.msra.mxu0 0.0
        %1132 = vmatpush.xpose.msra.mxu0 0.0
        %1133 = vmatpush.xpose.msra.mxu0 0.0
        %1134 = vmatpush.xpose.msra.mxu0 0.0
        %1135 = vmatpush.xpose.msra.mxu0 0.0
        %1136 = vmatpush.xpose.msra.mxu0 0.0
        %1137 = vmatpush.xpose.msra.mxu0 0.0
        %1138 = vmatpush.xpose.msra.mxu0 0.0
        %1139 = vmatpush.xpose.msra.mxu0 0.0
        %1140 = vmatpush.xpose.msra.mxu0 0.0
        %1141 = vmatpush.xpose.msra.mxu0 0.0
        %1142 = vmatpush.xpose.msra.mxu0 %v1125
        %1143 = vmatmul.f32.gmra.mxu0 %v1122
        %v1144 = vpop.f32.mrf.mxu0
        %v1145 = vadd.f32 0.0, %v1144
        %1146 = vdwg.mxu0
        %v1148 = vsel %vm1120, %v1072, 0
        %v1151 = vsel %vm1120, %v1095, 0
        %1153 = vmatpush.xpose.msra.mxu0 0.0
        %1154 = vmatpush.xpose.msra.mxu0 0.0
        %1155 = vmatpush.xpose.msra.mxu0 0.0
        %1156 = vmatpush.xpose.msra.mxu0 0.0
        %1157 = vmatpush.xpose.msra.mxu0 0.0
        %1158 = vmatpush.xpose.msra.mxu0 0.0
        %1159 = vmatpush.xpose.msra.mxu0 0.0
        %1160 = vmatpush.xpose.msra.mxu0 0.0
        %1161 = vmatpush.xpose.msra.mxu0 0.0
        %1162 = vmatpush.xpose.msra.mxu0 0.0
        %1163 = vmatpush.xpose.msra.mxu0 0.0
        %1164 = vmatpush.xpose.msra.mxu0 0.0
        %1165 = vmatpush.xpose.msra.mxu0 0.0
        %1166 = vmatpush.xpose.msra.mxu0 0.0
        %1167 = vmatpush.xpose.msra.mxu0 0.0
        %1168 = vmatpush.xpose.msra.mxu0 %v1151
        %1169 = vmatmul.f32.gmra.mxu0 %v1148
        %v1170 = vpop.f32.mrf.mxu0
        %v1171 = vadd.f32 0.0, %v1170
        %1172 = vdwg.mxu0
        %vm1173 = vcmask 64512
        %v1174 = vsel %vm1173, %v1145, -inf
        %1175 = vmax.xlane.f32.xlu0 %v1174
        %v1176 = vpop.xlane.xlu0 %1175
        %v1177 = vsel %vm1173, %v1171, -inf
        %1178 = vmax.xlane.f32.xlu0 %v1177
        %v1179 = vpop.xlane.xlu0 %1178
        %v1180 = vsub.f32 %v1145, %v1176
        %v1181 = vsub.f32 %v1171, %v1179
        %v1182 = vmul.f32 %v1180, 1.442695
        %v1183 = vpow.pop %v1182
        %v1184 = vmul.f32 %v1181, 1.442695
        %v1185 = vpow.pop %v1184
        %v1186 = vsel %vm1173, %v1183, 0.0
        %1187 = vadd.xlane.f32.xlu0 %v1186
        %v1188 = vpop.xlane.xlu0 %1187
        %v1189 = vsel %vm1173, %v1185, 0.0
        %1190 = vadd.xlane.f32.xlu0 %v1189
        %v1191 = vpop.xlane.xlu0 %1190
        %v1192 = vrcp.pop %v1188
        %v1193 = vrcp.pop %v1191
        %v1194 = vmul.f32 %v1183, %v1192
        %v1195 = vmul.f32 %v1185, %v1193
        %v1197 = vsel %vm1173, %v1194, 0
        %1199 = vmatpush.msra.mxu0 0.0
        %1200 = vmatpush.msra.mxu0 0.0
        %1201 = vmatpush.msra.mxu0 0.0
        %1202 = vmatpush.msra.mxu0 0.0
        %1203 = vmatpush.msra.mxu0 0.0
        %1204 = vmatpush.msra.mxu0 0.0
        %1205 = vmatpush.msra.mxu0 0.0
        %1206 = vmatpush.msra.mxu0 0.0
        %1207 = vmatpush.msra.mxu0 0.0
        %1208 = vmatpush.msra.mxu0 0.0
        %1209 = vmatpush.msra.mxu0 0.0
        %1210 = vmatpush.msra.mxu0 0.0
        %1211 = vmatpush.msra.mxu0 0.0
        %1212 = vmatpush.msra.mxu0 0.0
        %1213 = vmatpush.msra.mxu0 0.0
        %1214 = vmatpush.msra.mxu0 %v1115
        %1215 = vmatmul.f32.gmra.mxu0 %v1197
        %v1216 = vpop.f32.mrf.mxu0
        %v1217 = vadd.f32 0.0, %v1216
        %1218 = vdwg.mxu0
        %v1220 = vsel %vm1173, %v1195, 0
        %1222 = vmatpush.msra.mxu0 0.0
        %1223 = vmatpush.msra.mxu0 0.0
        %1224 = vmatpush.msra.mxu0 0.0
        %1225 = vmatpush.msra.mxu0 0.0
        %1226 = vmatpush.msra.mxu0 0.0
        %1227 = vmatpush.msra.mxu0 0.0
        %1228 = vmatpush.msra.mxu0 0.0
        %1229 = vmatpush.msra.mxu0 0.0
        %1230 = vmatpush.msra.mxu0 0.0
        %1231 = vmatpush.msra.mxu0 0.0
        %1232 = vmatpush.msra.mxu0 0.0
        %1233 = vmatpush.msra.mxu0 0.0
        %1234 = vmatpush.msra.mxu0 0.0
        %1235 = vmatpush.msra.mxu0 0.0
        %1236 = vmatpush.msra.mxu0 0.0
        %1237 = vmatpush.msra.mxu0 %v1118
        %1238 = vmatmul.f32.gmra.mxu0 %v1220
        %v1239 = vpop.f32.mrf.mxu0
        %v1240 = vadd.f32 0.0, %v1239
        %1241 = vdwg.mxu0
        %1242 = vrot.lane.b32.xlu0 %v1069, 64
        %v1243 = vpop.permute.xlu0 %1242
        %1244 = vrot.lane.b32.xlu0 %v1092, 64
        %v1245 = vpop.permute.xlu0 %1244
        %v1246 = vsel %vm1120, %v1243, 0
        %v1248 = vsel %vm1120, %v1245, 0
        %1250 = vmatpush.xpose.msra.mxu0 0.0
        %1251 = vmatpush.xpose.msra.mxu0 0.0
        %1252 = vmatpush.xpose.msra.mxu0 0.0
        %1253 = vmatpush.xpose.msra.mxu0 0.0
        %1254 = vmatpush.xpose.msra.mxu0 0.0
        %1255 = vmatpush.xpose.msra.mxu0 0.0
        %1256 = vmatpush.xpose.msra.mxu0 0.0
        %1257 = vmatpush.xpose.msra.mxu0 0.0
        %1258 = vmatpush.xpose.msra.mxu0 0.0
        %1259 = vmatpush.xpose.msra.mxu0 0.0
        %1260 = vmatpush.xpose.msra.mxu0 0.0
        %1261 = vmatpush.xpose.msra.mxu0 0.0
        %1262 = vmatpush.xpose.msra.mxu0 0.0
        %1263 = vmatpush.xpose.msra.mxu0 0.0
        %1264 = vmatpush.xpose.msra.mxu0 0.0
        %1265 = vmatpush.xpose.msra.mxu0 %v1248
        %1266 = vmatmul.f32.gmra.mxu0 %v1246
        %v1267 = vpop.f32.mrf.mxu0
        %v1268 = vadd.f32 0.0, %v1267
        %1269 = vdwg.mxu0
        %1270 = vrot.lane.b32.xlu0 %v1072, 64
        %v1271 = vpop.permute.xlu0 %1270
        %1272 = vrot.lane.b32.xlu0 %v1095, 64
        %v1273 = vpop.permute.xlu0 %1272
        %v1274 = vsel %vm1120, %v1271, 0
        %v1276 = vsel %vm1120, %v1273, 0
        %1278 = vmatpush.xpose.msra.mxu0 0.0
        %1279 = vmatpush.xpose.msra.mxu0 0.0
        %1280 = vmatpush.xpose.msra.mxu0 0.0
        %1281 = vmatpush.xpose.msra.mxu0 0.0
        %1282 = vmatpush.xpose.msra.mxu0 0.0
        %1283 = vmatpush.xpose.msra.mxu0 0.0
        %1284 = vmatpush.xpose.msra.mxu0 0.0
        %1285 = vmatpush.xpose.msra.mxu0 0.0
        %1286 = vmatpush.xpose.msra.mxu0 0.0
        %1287 = vmatpush.xpose.msra.mxu0 0.0
        %1288 = vmatpush.xpose.msra.mxu0 0.0
        %1289 = vmatpush.xpose.msra.mxu0 0.0
        %1290 = vmatpush.xpose.msra.mxu0 0.0
        %1291 = vmatpush.xpose.msra.mxu0 0.0
        %1292 = vmatpush.xpose.msra.mxu0 0.0
        %1293 = vmatpush.xpose.msra.mxu0 %v1276
        %1294 = vmatmul.f32.gmra.mxu0 %v1274
        %v1295 = vpop.f32.mrf.mxu0
        %v1296 = vadd.f32 0.0, %v1295
        %1297 = vdwg.mxu0
        %v1298 = vsel %vm1173, %v1268, -inf
        %1299 = vmax.xlane.f32.xlu0 %v1298
        %v1300 = vpop.xlane.xlu0 %1299
        %v1301 = vsel %vm1173, %v1296, -inf
        %1302 = vmax.xlane.f32.xlu0 %v1301
        %v1303 = vpop.xlane.xlu0 %1302
        %v1304 = vsub.f32 %v1268, %v1300
        %v1305 = vsub.f32 %v1296, %v1303
        %v1306 = vmul.f32 %v1304, 1.442695
        %v1307 = vpow.pop %v1306
        %v1308 = vmul.f32 %v1305, 1.442695
        %v1309 = vpow.pop %v1308
        %v1310 = vsel %vm1173, %v1307, 0.0
        %1311 = vadd.xlane.f32.xlu0 %v1310
        %v1312 = vpop.xlane.xlu0 %1311
        %v1313 = vsel %vm1173, %v1309, 0.0
        %1314 = vadd.xlane.f32.xlu0 %v1313
        %v1315 = vpop.xlane.xlu0 %1314
        %v1316 = vrcp.pop %v1312
        %v1317 = vrcp.pop %v1315
        %v1318 = vmul.f32 %v1307, %v1316
        %v1319 = vmul.f32 %v1309, %v1317
        %1321 = vrot.lane.b32.xlu0 %v1115, 64
        %v1322 = vpop.permute.xlu0 %1321
        %v1325 = vsel %vm1173, %v1318, 0
        %1327 = vmatpush.msra.mxu0 0.0
        %1328 = vmatpush.msra.mxu0 0.0
        %1329 = vmatpush.msra.mxu0 0.0
        %1330 = vmatpush.msra.mxu0 0.0
        %1331 = vmatpush.msra.mxu0 0.0
        %1332 = vmatpush.msra.mxu0 0.0
        %1333 = vmatpush.msra.mxu0 0.0
        %1334 = vmatpush.msra.mxu0 0.0
        %1335 = vmatpush.msra.mxu0 0.0
        %1336 = vmatpush.msra.mxu0 0.0
        %1337 = vmatpush.msra.mxu0 0.0
        %1338 = vmatpush.msra.mxu0 0.0
        %1339 = vmatpush.msra.mxu0 0.0
        %1340 = vmatpush.msra.mxu0 0.0
        %1341 = vmatpush.msra.mxu0 0.0
        %1342 = vmatpush.msra.mxu0 %v1322
        %1343 = vmatmul.f32.gmra.mxu0 %v1325
        %v1344 = vpop.f32.mrf.mxu0
        %v1345 = vadd.f32 0.0, %v1344
        %1346 = vdwg.mxu0
        %1348 = vrot.lane.b32.xlu0 %v1118, 64
        %v1349 = vpop.permute.xlu0 %1348
        %v1352 = vsel %vm1173, %v1319, 0
        %1354 = vmatpush.msra.mxu0 0.0
        %1355 = vmatpush.msra.mxu0 0.0
        %1356 = vmatpush.msra.mxu0 0.0
        %1357 = vmatpush.msra.mxu0 0.0
        %1358 = vmatpush.msra.mxu0 0.0
        %1359 = vmatpush.msra.mxu0 0.0
        %1360 = vmatpush.msra.mxu0 0.0
        %1361 = vmatpush.msra.mxu0 0.0
        %1362 = vmatpush.msra.mxu0 0.0
        %1363 = vmatpush.msra.mxu0 0.0
        %1364 = vmatpush.msra.mxu0 0.0
        %1365 = vmatpush.msra.mxu0 0.0
        %1366 = vmatpush.msra.mxu0 0.0
        %1367 = vmatpush.msra.mxu0 0.0
        %1368 = vmatpush.msra.mxu0 0.0
        %1369 = vmatpush.msra.mxu0 %v1349
        %1370 = vmatmul.f32.gmra.mxu0 %v1352
        %v1371 = vpop.f32.mrf.mxu0
        %v1372 = vadd.f32 0.0, %v1371
        %1373 = vdwg.mxu0
        %1376 = vrot.lane.b32.xlu0 %v1345, 64
        %v1377 = vpop.permute.xlu0 %1376
        %1378 = vrot.lane.b32.xlu0 %v1372, 64
        %v1379 = vpop.permute.xlu0 %1378
        %v1382 = vsel %vm1120, %v1217, %v1377
        %v1383 = vsel %vm1120, %v1240, %v1379
        %v1384 = vld [vmem:[%s785] sm:$0xff]
        %v1385 = vld [vmem:[%s785 + $0x8] sm:$0xff]
        %v1386 = vld [vmem:[%s785 + $0x10] sm:$0xff]
        %v1387 = vld [vmem:[%s785 + $0x18] sm:$0xff]
        %v1388 = vld [vmem:[%s785 + $0x20] sm:$0xff]
        %v1389 = vld [vmem:[%s785 + $0x28] sm:$0xff]
        %v1390 = vld [vmem:[%s785 + $0x30] sm:$0xff]
        %v1391 = vld [vmem:[%s785 + $0x38] sm:$0xff]
        %v1392 = vld [vmem:[%s785 + $0x40] sm:$0xff]
        %v1393 = vld [vmem:[%s785 + $0x48] sm:$0xff]
        %v1394 = vld [vmem:[%s785 + $0x50] sm:$0xff]
        %v1395 = vld [vmem:[%s785 + $0x58] sm:$0xff]
        %v1396 = vld [vmem:[%s785 + $0x60] sm:$0xff]
        %v1397 = vld [vmem:[%s785 + $0x68] sm:$0xff]
        %v1398 = vld [vmem:[%s785 + $0x70] sm:$0xff]
        %v1399 = vld [vmem:[%s785 + $0x78] sm:$0xff]
        %v1400 = vld [vmem:[%s942] sm:$0x1]
        %v1402 = vperm.slane %v1400, 0
        %1404 = vmatpush.msra.mxu0 %v1399
        %1405 = vmatpush.msra.mxu0 %v1398
        %1406 = vmatpush.msra.mxu0 %v1397
        %1407 = vmatpush.msra.mxu0 %v1396
        %1408 = vmatpush.msra.mxu0 %v1395
        %1409 = vmatpush.msra.mxu0 %v1394
        %1410 = vmatpush.msra.mxu0 %v1393
        %1411 = vmatpush.msra.mxu0 %v1392
        %1412 = vmatpush.msra.mxu0 %v1391
        %1413 = vmatpush.msra.mxu0 %v1390
        %1414 = vmatpush.msra.mxu0 %v1389
        %1415 = vmatpush.msra.mxu0 %v1388
        %1416 = vmatpush.msra.mxu0 %v1387
        %1417 = vmatpush.msra.mxu0 %v1386
        %1418 = vmatpush.msra.mxu0 %v1385
        %1419 = vmatpush.msra.mxu0 %v1384
        %1420 = vmatmul.f32.gmra.mxu0 %v1382
        %v1421 = vpop.f32.mrf.mxu0
        %v1422 = vadd.f32 %v1402, %v1421
        %1423 = vmatmul.f32.gmra.mxu0 %v1383
        %v1424 = vpop.f32.mrf.mxu0
        %v1425 = vadd.f32 %v1402, %v1424
        %1426 = vdwg.mxu0
        %v1427 = vadd.f32 %v1041, %v1422
        %v1428 = vadd.f32 %v1042, %v1425
        %v1429 = vld [vmem:[%s794] sm:$0x1]
        %v1430 = vld [vmem:[%s803] sm:$0x1]
        %1431 = vadd.xlane.f32.xlu0 %v1427
        %v1432 = vpop.xlane.xlu0 %1431
        %1433 = vadd.xlane.f32.xlu0 %v1428
        %v1434 = vpop.xlane.xlu0 %1433
        %v1435 = vrcp.pop 128.0
        %v1436 = vmul.f32 128.0, %v1435
        %v1437 = vsub.f32 1.0, %v1436
        %v1438 = vmul.f32 %v1435, %v1437
        %v1439 = vadd.f32 %v1435, %v1438
        %vm1440 = vweird.f32 %v1435
        %v1441 = vsel %vm1440, %v1435, %v1439
        %v1442 = vmul.f32 %v1432, %v1441
        %v1443 = vmul.f32 %v1434, %v1441
        %v1444 = vsub.f32 %v1427, %v1442
        %v1445 = vsub.f32 %v1428, %v1443
        %v1446 = vmul.f32 %v1444, %v1444
        %v1447 = vmul.f32 %v1445, %v1445
        %1448 = vadd.xlane.f32.xlu0 %v1446
        %v1449 = vpop.xlane.xlu0 %1448
        %1450 = vadd.xlane.f32.xlu0 %v1447
        %v1451 = vpop.xlane.xlu0 %1450
        %v1452 = vmul.f32 %v1449, %v1441
        %v1453 = vmul.f32 %v1451, %v1441
        %v1454 = vadd.f32 %v1452, 1e-05
        %v1455 = vadd.f32 %v1453, 1e-05
        %v1456 = vrsqrt.pop %v1454
        %v1457 = vmul.f32 %v1456, %v1454
        %v1458 = vmul.f32 %v1457, %v1456
        %v1459 = vmul.f32 0.5, %v1458
        %v1460 = vsub.f32 1.5, %v1459
        %v1461 = vmul.f32 %v1456, %v1460
        %vm1462 = vweird.f32 %v1454
        %vm1463 = vweird.f32 %v1456
        %vm1464 = vmor %vm1462, %vm1463
        %v1465 = vsel %vm1464, %v1456, %v1461
        %v1466 = vrsqrt.pop %v1455
        %v1467 = vmul.f32 %v1466, %v1455
        %v1468 = vmul.f32 %v1467, %v1466
        %v1469 = vmul.f32 0.5, %v1468
        %v1470 = vsub.f32 1.5, %v1469
        %v1471 = vmul.f32 %v1466, %v1470
        %vm1472 = vweird.f32 %v1455
        %vm1473 = vweird.f32 %v1466
        %vm1474 = vmor %vm1472, %vm1473
        %v1475 = vsel %vm1474, %v1466, %v1471
        %v1476 = vmul.f32 %v1444, %v1465
        %v1477 = vmul.f32 %v1445, %v1475
        %v1479 = vperm.slane %v1429, 0
        %v1481 = vmul.f32 %v1476, %v1479
        %v1482 = vmul.f32 %v1477, %v1479
        %v1484 = vperm.slane %v1430, 0
        %v1486 = vadd.f32 %v1481, %v1484
        %v1487 = vadd.f32 %v1482, %v1484
        %v1488 = vld [vmem:[%s812] sm:$0x1]
        %v1490 = vperm.slane %v1488, 0
        %v1492 = vmul.f32 %v1486, %v1490
        %v1493 = vmul.f32 %v1487, %v1490
        %1494 = vadd.xlane.f32.xlu0 %v1492
        %v1495 = vpop.xlane.xlu0 %1494
        %1496 = vadd.xlane.f32.xlu0 %v1493
        %v1497 = vpop.xlane.xlu0 %1496
        %v1498 = vxor.u32 %v1495, 2147483648
        %v1499 = vxor.u32 %v1497, 2147483648
        %v1500 = vmul.f32 %v1498, 1.442695
        %v1501 = vpow.pop %v1500
        %v1502 = vmul.f32 %v1499, 1.442695
        %v1503 = vpow.pop %v1502
        %v1504 = vadd.f32 %v1501, 1.0
        %v1505 = vadd.f32 %v1503, 1.0
        %v1506 = vrcp.pop %v1504
        %v1507 = vmul.f32 %v1504, %v1506
        %v1508 = vsub.f32 1.0, %v1507
        %v1509 = vmul.f32 %v1506, %v1508
        %v1510 = vadd.f32 %v1506, %v1509
        %vm1511 = vweird.f32 %v1504
        %vm1512 = vweird.f32 %v1506
        %vm1513 = vmor %vm1511, %vm1512
        %v1514 = vsel %vm1513, %v1506, %v1510
        %v1515 = vand.u32 2147483647, %v1504
        %vm1516 = vcmp.eq.f32.partialorder %v1515, 8.507059e+37
        %v1517 = vand.u32 %v1504, 2147483648
        %v1518 = vor.u32 1.1754944e-38, %v1517
        %v1519 = vsel %vm1516, %v1518, %v1514
        %v1520 = vmul.f32 1.0, %v1519
        %v1521 = vrcp.pop %v1505
        %v1522 = vmul.f32 %v1505, %v1521
        %v1523 = vsub.f32 1.0, %v1522
        %v1524 = vmul.f32 %v1521, %v1523
        %v1525 = vadd.f32 %v1521, %v1524
        %vm1526 = vweird.f32 %v1505
        %vm1527 = vweird.f32 %v1521
        %vm1528 = vmor %vm1526, %vm1527
        %v1529 = vsel %vm1528, %v1521, %v1525
        %v1530 = vand.u32 2147483647, %v1505
        %vm1531 = vcmp.eq.f32.partialorder %v1530, 8.507059e+37
        %v1532 = vand.u32 %v1505, 2147483648
        %v1533 = vor.u32 1.1754944e-38, %v1532
        %v1534 = vsel %vm1531, %v1533, %v1529
        %v1535 = vmul.f32 1.0, %v1534
        %v1536 = vld [vmem:[%s822] sm:$0xff]
        %v1537 = vld [vmem:[%s822 + $0x8] sm:$0xff]
        %v1538 = vld [vmem:[%s822 + $0x10] sm:$0xff]
        %v1539 = vld [vmem:[%s822 + $0x18] sm:$0xff]
        %v1540 = vld [vmem:[%s822 + $0x20] sm:$0xff]
        %v1541 = vld [vmem:[%s822 + $0x28] sm:$0xff]
        %v1542 = vld [vmem:[%s822 + $0x30] sm:$0xff]
        %v1543 = vld [vmem:[%s822 + $0x38] sm:$0xff]
        %v1544 = vld [vmem:[%s822 + $0x40] sm:$0xff]
        %v1545 = vld [vmem:[%s822 + $0x48] sm:$0xff]
        %v1546 = vld [vmem:[%s822 + $0x50] sm:$0xff]
        %v1547 = vld [vmem:[%s822 + $0x58] sm:$0xff]
        %v1548 = vld [vmem:[%s822 + $0x60] sm:$0xff]
        %v1549 = vld [vmem:[%s822 + $0x68] sm:$0xff]
        %v1550 = vld [vmem:[%s822 + $0x70] sm:$0xff]
        %v1551 = vld [vmem:[%s822 + $0x78] sm:$0xff]
        %v1552 = vld [vmem:[%s822 + $0x80] sm:$0xff]
        %v1553 = vld [vmem:[%s822 + $0x88] sm:$0xff]
        %v1554 = vld [vmem:[%s822 + $0x90] sm:$0xff]
        %v1555 = vld [vmem:[%s822 + $0x98] sm:$0xff]
        %v1556 = vld [vmem:[%s822 + $0xa0] sm:$0xff]
        %v1557 = vld [vmem:[%s822 + $0xa8] sm:$0xff]
        %v1558 = vld [vmem:[%s822 + $0xb0] sm:$0xff]
        %v1559 = vld [vmem:[%s822 + $0xb8] sm:$0xff]
        %v1560 = vld [vmem:[%s822 + $0xc0] sm:$0xff]
        %v1561 = vld [vmem:[%s822 + $0xc8] sm:$0xff]
        %v1562 = vld [vmem:[%s822 + $0xd0] sm:$0xff]
        %v1563 = vld [vmem:[%s822 + $0xd8] sm:$0xff]
        %v1564 = vld [vmem:[%s822 + $0xe0] sm:$0xff]
        %v1565 = vld [vmem:[%s822 + $0xe8] sm:$0xff]
        %v1566 = vld [vmem:[%s822 + $0xf0] sm:$0xff]
        %v1567 = vld [vmem:[%s822 + $0xf8] sm:$0xff]
        %v1568 = vld [vmem:[%s958] sm:$0x3]
        %v1570 = vperm.slane %v1568, 0
        %v1571 = vperm.slane %v1568, 1
        %1574 = vmatpush.msra.mxu0 %v1566
        %1575 = vmatpush.msra.mxu0 %v1564
        %1576 = vmatpush.msra.mxu0 %v1562
        %1577 = vmatpush.msra.mxu0 %v1560
        %1578 = vmatpush.msra.mxu0 %v1558
        %1579 = vmatpush.msra.mxu0 %v1556
        %1580 = vmatpush.msra.mxu0 %v1554
        %1581 = vmatpush.msra.mxu0 %v1552
        %1582 = vmatpush.msra.mxu0 %v1550
        %1583 = vmatpush.msra.mxu0 %v1548
        %1584 = vmatpush.msra.mxu0 %v1546
        %1585 = vmatpush.msra.mxu0 %v1544
        %1586 = vmatpush.msra.mxu0 %v1542
        %1587 = vmatpush.msra.mxu0 %v1540
        %1588 = vmatpush.msra.mxu0 %v1538
        %1589 = vmatpush.msra.mxu0 %v1536
        %1590 = vmatmul.f32.gmra.mxu0 %v1486
        %v1591 = vpop.f32.mrf.mxu0
        %v1592 = vadd.f32 %v1570, %v1591
        %1593 = vmatmul.f32.gmra.mxu0 %v1487
        %v1594 = vpop.f32.mrf.mxu0
        %v1595 = vadd.f32 %v1570, %v1594
        %1596 = vdwg.mxu0
        %1597 = vmatpush.msra.mxu0 %v1567
        %1598 = vmatpush.msra.mxu0 %v1565
        %1599 = vmatpush.msra.mxu0 %v1563
        %1600 = vmatpush.msra.mxu0 %v1561
        %1601 = vmatpush.msra.mxu0 %v1559
        %1602 = vmatpush.msra.mxu0 %v1557
        %1603 = vmatpush.msra.mxu0 %v1555
        %1604 = vmatpush.msra.mxu0 %v1553
        %1605 = vmatpush.msra.mxu0 %v1551
        %1606 = vmatpush.msra.mxu0 %v1549
        %1607 = vmatpush.msra.mxu0 %v1547
        %1608 = vmatpush.msra.mxu0 %v1545
        %1609 = vmatpush.msra.mxu0 %v1543
        %1610 = vmatpush.msra.mxu0 %v1541
        %1611 = vmatpush.msra.mxu0 %v1539
        %1612 = vmatpush.msra.mxu0 %v1537
        %1613 = vmatmul.f32.gmra.mxu0 %v1486
        %v1614 = vpop.f32.mrf.mxu0
        %v1615 = vadd.f32 %v1571, %v1614
        %1616 = vmatmul.f32.gmra.mxu0 %v1487
        %v1617 = vpop.f32.mrf.mxu0
        %v1618 = vadd.f32 %v1571, %v1617
        %1619 = vdwg.mxu0
        %v1620 = vmul.f32 %v1520, %v1592
        %v1621 = vmul.f32 %v1520, %v1615
        %v1622 = vmul.f32 %v1535, %v1595
        %v1623 = vmul.f32 %v1535, %v1618
        %v1624 = vmax.f32 %v1620, 0.0
        %v1625 = vmax.f32 %v1621, 0.0
        %v1626 = vmax.f32 %v1622, 0.0
        %v1627 = vmax.f32 %v1623, 0.0
        %v1628 = vld [vmem:[%s832] sm:$0xff]
        %v1629 = vld [vmem:[%s832 + $0x8] sm:$0xff]
        %v1630 = vld [vmem:[%s832 + $0x10] sm:$0xff]
        %v1631 = vld [vmem:[%s832 + $0x18] sm:$0xff]
        %v1632 = vld [vmem:[%s832 + $0x20] sm:$0xff]
        %v1633 = vld [vmem:[%s832 + $0x28] sm:$0xff]
        %v1634 = vld [vmem:[%s832 + $0x30] sm:$0xff]
        %v1635 = vld [vmem:[%s832 + $0x38] sm:$0xff]
        %v1636 = vld [vmem:[%s832 + $0x40] sm:$0xff]
        %v1637 = vld [vmem:[%s832 + $0x48] sm:$0xff]
        %v1638 = vld [vmem:[%s832 + $0x50] sm:$0xff]
        %v1639 = vld [vmem:[%s832 + $0x58] sm:$0xff]
        %v1640 = vld [vmem:[%s832 + $0x60] sm:$0xff]
        %v1641 = vld [vmem:[%s832 + $0x68] sm:$0xff]
        %v1642 = vld [vmem:[%s832 + $0x70] sm:$0xff]
        %v1643 = vld [vmem:[%s832 + $0x78] sm:$0xff]
        %v1644 = vld [vmem:[%s832 + $0x80] sm:$0xff]
        %v1645 = vld [vmem:[%s832 + $0x88] sm:$0xff]
        %v1646 = vld [vmem:[%s832 + $0x90] sm:$0xff]
        %v1647 = vld [vmem:[%s832 + $0x98] sm:$0xff]
        %v1648 = vld [vmem:[%s832 + $0xa0] sm:$0xff]
        %v1649 = vld [vmem:[%s832 + $0xa8] sm:$0xff]
        %v1650 = vld [vmem:[%s832 + $0xb0] sm:$0xff]
        %v1651 = vld [vmem:[%s832 + $0xb8] sm:$0xff]
        %v1652 = vld [vmem:[%s832 + $0xc0] sm:$0xff]
        %v1653 = vld [vmem:[%s832 + $0xc8] sm:$0xff]
        %v1654 = vld [vmem:[%s832 + $0xd0] sm:$0xff]
        %v1655 = vld [vmem:[%s832 + $0xd8] sm:$0xff]
        %v1656 = vld [vmem:[%s832 + $0xe0] sm:$0xff]
        %v1657 = vld [vmem:[%s832 + $0xe8] sm:$0xff]
        %v1658 = vld [vmem:[%s832 + $0xf0] sm:$0xff]
        %v1659 = vld [vmem:[%s832 + $0xf8] sm:$0xff]
        %v1660 = vld [vmem:[%s967] sm:$0x1]
        %v1662 = vperm.slane %v1660, 0
        %1664 = vmatpush.msra.mxu0 %v1643
        %1665 = vmatpush.msra.mxu0 %v1642
        %1666 = vmatpush.msra.mxu0 %v1641
        %1667 = vmatpush.msra.mxu0 %v1640
        %1668 = vmatpush.msra.mxu0 %v1639
        %1669 = vmatpush.msra.mxu0 %v1638
        %1670 = vmatpush.msra.mxu0 %v1637
        %1671 = vmatpush.msra.mxu0 %v1636
        %1672 = vmatpush.msra.mxu0 %v1635
        %1673 = vmatpush.msra.mxu0 %v1634
        %1674 = vmatpush.msra.mxu0 %v1633
        %1675 = vmatpush.msra.mxu0 %v1632
        %1676 = vmatpush.msra.mxu0 %v1631
        %1677 = vmatpush.msra.mxu0 %v1630
        %1678 = vmatpush.msra.mxu0 %v1629
        %1679 = vmatpush.msra.mxu0 %v1628
        %1680 = vmatmul.f32.gmra.mxu0 %v1624
        %v1681 = vpop.f32.mrf.mxu0
        %v1682 = vadd.f32 %v1662, %v1681
        %1683 = vmatmul.f32.gmra.mxu0 %v1626
        %v1684 = vpop.f32.mrf.mxu0
        %v1685 = vadd.f32 %v1662, %v1684
        %1686 = vdwg.mxu0
        %1687 = vmatpush.msra.mxu0 %v1659
        %1688 = vmatpush.msra.mxu0 %v1658
        %1689 = vmatpush.msra.mxu0 %v1657
        %1690 = vmatpush.msra.mxu0 %v1656
        %1691 = vmatpush.msra.mxu0 %v1655
        %1692 = vmatpush.msra.mxu0 %v1654
        %1693 = vmatpush.msra.mxu0 %v1653
        %1694 = vmatpush.msra.mxu0 %v1652
        %1695 = vmatpush.msra.mxu0 %v1651
        %1696 = vmatpush.msra.mxu0 %v1650
        %1697 = vmatpush.msra.mxu0 %v1649
        %1698 = vmatpush.msra.mxu0 %v1648
        %1699 = vmatpush.msra.mxu0 %v1647
        %1700 = vmatpush.msra.mxu0 %v1646
        %1701 = vmatpush.msra.mxu0 %v1645
        %1702 = vmatpush.msra.mxu0 %v1644
        %1703 = vmatmul.f32.gmra.mxu0 %v1625
        %v1704 = vpop.f32.mrf.mxu0
        %v1705 = vadd.f32 %v1682, %v1704
        %1706 = vmatmul.f32.gmra.mxu0 %v1627
        %v1707 = vpop.f32.mrf.mxu0
        %v1708 = vadd.f32 %v1685, %v1707
        %1709 = vdwg.mxu0
        %v1710 = vadd.f32 %v1486, %v1705
        %v1711 = vadd.f32 %v1487, %v1708
        %v1712 = vld [vmem:[%s974] sm:$0x1]
        %v1713 = vld [vmem:[%s981] sm:$0x1]
        %1714 = vadd.xlane.f32.xlu0 %v1710
        %v1715 = vpop.xlane.xlu0 %1714
        %1716 = vadd.xlane.f32.xlu0 %v1711
        %v1717 = vpop.xlane.xlu0 %1716
        %v1718 = vmul.f32 %v1715, %v1441
        %v1719 = vmul.f32 %v1717, %v1441
        %v1720 = vsub.f32 %v1710, %v1718
        %v1721 = vsub.f32 %v1711, %v1719
        %v1722 = vmul.f32 %v1720, %v1720
        %v1723 = vmul.f32 %v1721, %v1721
        %1724 = vadd.xlane.f32.xlu0 %v1722
        %v1725 = vpop.xlane.xlu0 %1724
        %1726 = vadd.xlane.f32.xlu0 %v1723
        %v1727 = vpop.xlane.xlu0 %1726
        %v1728 = vmul.f32 %v1725, %v1441
        %v1729 = vmul.f32 %v1727, %v1441
        %v1730 = vadd.f32 %v1728, 1e-05
        %v1731 = vadd.f32 %v1729, 1e-05
        %v1732 = vrsqrt.pop %v1730
        %v1733 = vmul.f32 %v1732, %v1730
        %v1734 = vmul.f32 %v1733, %v1732
        %v1735 = vmul.f32 0.5, %v1734
        %v1736 = vsub.f32 1.5, %v1735
        %v1737 = vmul.f32 %v1732, %v1736
        %vm1738 = vweird.f32 %v1730
        %vm1739 = vweird.f32 %v1732
        %vm1740 = vmor %vm1738, %vm1739
        %v1741 = vsel %vm1740, %v1732, %v1737
        %v1742 = vrsqrt.pop %v1731
        %v1743 = vmul.f32 %v1742, %v1731
        %v1744 = vmul.f32 %v1743, %v1742
        %v1745 = vmul.f32 0.5, %v1744
        %v1746 = vsub.f32 1.5, %v1745
        %v1747 = vmul.f32 %v1742, %v1746
        %vm1748 = vweird.f32 %v1731
        %vm1749 = vweird.f32 %v1742
        %vm1750 = vmor %vm1748, %vm1749
        %v1751 = vsel %vm1750, %v1742, %v1747
        %v1752 = vmul.f32 %v1720, %v1741
        %v1753 = vmul.f32 %v1721, %v1751
        %v1755 = vperm.slane %v1712, 0
        %v1757 = vmul.f32 %v1752, %v1755
        %v1758 = vmul.f32 %v1753, %v1755
        %v1760 = vperm.slane %v1713, 0
        %v1762 = vadd.f32 %v1757, %v1760
        %v1763 = vadd.f32 %v1758, %v1760
        %1764 = vst [vmem:[#allocation17] sm:$0xff] %v1762
        %1765 = vst [vmem:[#allocation17 + $0x8] sm:$0xff] %v1763
        // Predicated region
        $region117: #{tpu_custom_call.1} parent=75 // pred_check
          %p1766 = pneg %p485
        $region118: #{tpu_custom_call.1} parent=75 // pred_check_branch
          %1768 = sbr.rel (%p1766) target = $region120
        $region119: #{tpu_custom_call.1} parent=75 // pred_region
          %s1769 = smul.u32 2, %s43
          %1771 = vsyncadd [#allocation4], 0
          %s1772 = smul.addr %s1769, 8
          %s1773 = scalar_lea.hbm %s14, %s1772
          %s1774 = sshll.u32 [#allocation17], 4
          %s1775 = int_to_ptr.vmem [resolvable:$true] %s1774
          %s1776 = sshll.u32 %s1773, 4
          %s1777 = int_to_ptr.hbm [resolvable:$true] %s1776
          %1782 = dma.vmem_to_hbm [thread:$0]  %s1775, 256, %s1777, [#allocation4], 128, 128, 8
        $region120: #{tpu_custom_call.1} parent=75 // pred_fallthru
          _
        // Predicated region
        $region121: #{tpu_custom_call.1} parent=75 // pred_check
          %p1783 = pneg %p485
        $region122: #{tpu_custom_call.1} parent=75 // pred_check_branch
          %1785 = sbr.rel (%p1783) target = $region124
        $region123: #{tpu_custom_call.1} parent=75 // pred_region
          %1787 = dma.done [#allocation4], 256
        $region124: #{tpu_custom_call.1} parent=75 // pred_fallthru
          _
      $region76: #{tpu_custom_call.1} parent=5 // pred_fallthru
        _
      %p1788 = scmp.le.s32.totalorder 2, %s34
      // Predicated region
      $region125: #{tpu_custom_call.1} parent=5 // pred_check
        %p1789 = pneg %p1788
      $region126: #{tpu_custom_call.1} parent=5 // pred_check_branch
        %1791 = sbr.rel (%p1789) target = $region128
      $region127: #{tpu_custom_call.1} parent=5 // pred_region
        %s1792 = ssub.s32 %s34, 2
      $region128: #{tpu_custom_call.1} parent=5 // pred_fallthru
        _
    $region6: #{tpu_custom_call.1} parent=1 // loop_footer
      %s38 = sadd.s32 1, %s34
    $region7: #{tpu_custom_call.1} parent=1 // loop_footer_branch
      %33 = sbr.rel target = $region3
    $region8: #{tpu_custom_call.1} parent=1 // loop_exit
      _
    %1793 = vsyncpa [#allocation3], 1
    %s1794 = scalar_lea.sflag [#allocation3], 1
    %1795 = vsyncpa %s1794, 1
    %1796 = vsyncpa [#allocation6], 1
    %s1797 = scalar_lea.sflag [#allocation6], 1
    %1798 = vsyncpa %s1797, 1
    %1799 = vsyncpa [#allocation9], 1
    %s1800 = scalar_lea.sflag [#allocation9], 1
    %1801 = vsyncpa %s1800, 1
    %1802 = vsyncpa [#allocation12], 1
    %s1803 = scalar_lea.sflag [#allocation12], 1
    %1804 = vsyncpa %s1803, 1
    %1805 = vsyncpa [#allocation15], 1
    %s1806 = scalar_lea.sflag [#allocation15], 1
    %1807 = vsyncpa %s1806, 1
    %1808 = vsyncpa [#allocation4], 1
    %s1809 = scalar_lea.sflag [#allocation4], 1
    %1810 = vsyncpa %s1809, 1

</llo_original>
